<compile_context>
chip_gen: v7x
topology: tpu7x:2x2x1
jax: 0.10.0
libtpu: 0.0.40
codegen_flags: <defaults>
</compile_context>

<pallas_src>
import functools

import jax
import jax.numpy as jnp
from jax.experimental import pallas as pl
from jax.experimental.pallas import tpu as pltpu


def _round_up(v, m):
    return ((v + m - 1) // m) * m


def _vqvae_kernel(x_ref,
                  ew1_ref, eb1_ref, ew2_ref, eb2_ref, muw_ref, mub_ref,
                  cb_aug_ref, cb_f32_ref,
                  dw1_ref, db1_ref, dw2_ref, db2_ref, dw3_ref, db3_ref,
                  sc_ref,
                  out_ref, loss_ref,
                  *, total_rows, compute_recon, bf16_tanh):
    f32 = jnp.float32
    bf16 = jnp.bfloat16

    tile_rows = x_ref.shape[0]
    row0 = pl.program_id(0) * tile_rows

    # ScaledTanh scales and their precomputed reciprocals (SMEM scalars):
    # tanh(h / s) * s  ->  tanh(h * inv_s) * s  (no per-element divide).
    s_e1, s_e2, s_d1, s_d2 = sc_ref[0], sc_ref[1], sc_ref[2], sc_ref[3]
    i_e1, i_e2, i_d1, i_d2 = sc_ref[4], sc_ref[5], sc_ref[6], sc_ref[7]

    if bf16_tanh:
        def scaled_tanh(h, inv_s, s):
            # v6e / v7x: EUP supports bf16 -> run tanh in bf16; result feeds
            # the next MXU op directly (no extra cast pass).
            return jnp.tanh((h * inv_s).astype(bf16)) * s.astype(bf16)
    else:
        def scaled_tanh(h, inv_s, s):
            # v5e: no bf16 VPU/EUP -> keep the transcendental in f32.
            return (jnp.tanh(h * inv_s) * s).astype(bf16)

    # ---------------- encoder -> z_e ----------------
    xb = x_ref[...].astype(bf16)
    h = jnp.dot(xb, ew1_ref[...], preferred_element_type=f32) + eb1_ref[...]
    h = scaled_tanh(h, i_e1, s_e1)
    h = jnp.dot(h, ew2_ref[...], preferred_element_type=f32) + eb2_ref[...]
    h = scaled_tanh(h, i_e2, s_e2)
    z_e = jnp.dot(h, muw_ref[...],
                  preferred_element_type=f32) + mub_ref[...]   # (TN, latent) f32

    # ---------------- vector quantization ----------------
    # dist_j = -2 z_e . C_j + ||C_j||^2  (||z_e||^2 dropped: per-row constant).
    # Both the -2 scale and the ||C||^2 bias are folded into the MXU pass:
    # z_aug = [-2*z_e, 1], cb_aug = [C ; ||C||^2].
    cb_aug = cb_aug_ref[...]                       # (latent+1, E) bf16
    n_emb = cb_aug.shape[1]
    ones_col = jnp.ones((tile_rows, 1), f32)
    z_aug = jnp.concatenate([z_e * -2.0, ones_col], axis=1).astype(bf16)
    dist = jnp.dot(z_aug, cb_aug, preferred_element_type=f32)  # (TN, E) f32

    min_d = jnp.min(dist, axis=1, keepdims=True)
    col = jax.lax.broadcasted_iota(jnp.int32, dist.shape, 1)
    # first index achieving the min (matches torch argmin/argmax tie-break)
    cand = jnp.where(dist <= min_d, col, n_emb)
    first_idx = jnp.min(cand, axis=1, keepdims=True)
    onehot = (col == first_idx).astype(f32)        # (TN, E)

    # z_q = onehot @ codebook.T against the f32 codebook -> exact code vectors
    # for the decoder input and the commitment / codebook loss.
    z_q = jax.lax.dot_general(onehot, cb_f32_ref[...],
                              (((1,), (1,)), ((), ())),
                              preferred_element_type=f32)      # (TN, latent)

    # ---------------- decoder (straight-through values == z_q) -------------
    d = jnp.dot(z_q.astype(bf16), dw1_ref[...],
                preferred_element_type=f32) + db1_ref[...]
    d = scaled_tanh(d, i_d1, s_d1)
    d = jnp.dot(d, dw2_ref[...], preferred_element_type=f32) + db2_ref[...]
    d = scaled_tanh(d, i_d2, s_d2)
    out = jnp.dot(d, dw3_ref[...],
                  preferred_element_type=f32) + db3_ref[...]
    out_ref[...] = out.astype(out_ref.dtype)       # (TN, Dout)

    # -------------- per-tile partial loss sums (NaN-safe tail mask) --------
    row = jax.lax.broadcasted_iota(jnp.int32, (tile_rows, 1), 0) + row0
    row_ok = row < total_rows                      # padded tail rows -> False

    dq = jnp.where(row_ok, z_q - z_e, 0.0)         # select kills NaN/Inf
    sse_q = jnp.sum(dq * dq)                       # sum((z_q - z_e)^2)
    if compute_recon:
        dr = jnp.where(row_ok, out - x_ref[...].astype(f32), 0.0)
        sse_r = jnp.sum(dr * dr)                   # sum((compressed - x)^2)
    else:
        sse_r = jnp.float32(0.0)                   # Din != Dout: never used

    sub = jax.lax.broadcasted_iota(jnp.int32, loss_ref.shape, 1)
    loss_ref[...] = jnp.where(sub == 0, sse_q,
                              jnp.where(sub == 1, sse_r, 0.0))


def praxis_vqvae_forward(x, params, *, tile_rows=4096):
    """x: (B, S, Din) -> (compressed (B, S, Dout), vq_loss scalar)."""
    B, S, Din = x.shape
    N = B * S
    latent, _ = params["codebook"].shape
    Dout = params["dec_w3"].shape[1]

    x_flat = x.reshape(N, Din)

    # Row tile: large to amortize the per-step overhead and the MXU weight
    # reloads, multiple of 8 (sublane), and capped at ceil(N/2) so there are
    # always >= 2 grid steps when possible (keeps both TensorCores busy with
    # dimension_semantics=("parallel",) on v7x).
    TN = min(tile_rows, _round_up(N, 8), _round_up(-(-N // 2), 8))
    num_tiles = -(-N // TN)

    bf16 = jnp.bfloat16
    # Cast weights / codebook to bf16 once in the wrapper (f32 accumulation in
    # the kernel); biases stay f32.
    ew1 = params["enc_w1"].astype(bf16)
    ew2 = params["enc_w2"].astype(bf16)
    muw = params["mu_w"].astype(bf16)
    dw1 = params["dec_w1"].astype(bf16)
    dw2 = params["dec_w2"].astype(bf16)
    dw3 = params["dec_w3"].astype(bf16)
    eb1, eb2 = params["enc_b1"], params["enc_b2"]
    mub = params["mu_b"]
    db1, db2, db3 = params["dec_b1"], params["dec_b2"], params["dec_b3"]

    cb_f32 = params["codebook"]                    # (latent, E) f32, ~8 KiB
    cb_bf = cb_f32.astype(bf16)
    # ||C||^2 from the SAME bf16 codebook used in the distance matmul so the
    # kernel distance equals ||z - C_bf16||^2 (up to the dropped ||z||^2).
    cbsq = jnp.sum(cb_bf.astype(jnp.float32) ** 2, axis=0, keepdims=True)
    cb_aug = jnp.concatenate([cb_bf, cbsq.astype(bf16)], axis=0)  # (latent+1, E)

    # [s_enc1, s_enc2, s_dec1, s_dec2, 1/s_enc1, 1/s_enc2, 1/s_dec1, 1/s_dec2]
    scales = params["scales"].astype(jnp.float32)
    sc = jnp.concatenate([scales, 1.0 / scales])   # (8,) -> SMEM

    w_args = (ew1, eb1, ew2, eb2, muw, mub, cb_aug, cb_f32,
              dw1, db1, dw2, db2, dw3, db3)

    x_spec = pl.BlockSpec((TN, Din), lambda i: (i, 0))
    w_specs = [pl.BlockSpec(a.shape, lambda i: (0, 0)) for a in w_args]
    sc_spec = pl.BlockSpec(memory_space=pltpu.MemorySpace.SMEM)

    out_specs = (pl.BlockSpec((TN, Dout), lambda i: (i, 0)),
                 pl.BlockSpec((1, 8, 128), lambda i: (i, 0, 0)))
    out_shape = (jax.ShapeDtypeStruct((N, Dout), x.dtype),
                 jax.ShapeDtypeStruct((num_tiles, 8, 128), jnp.float32))

    # bf16 transcendentals only where the EUP supports them (v6e / v7x).
    try:
        kind = jax.devices()[0].device_kind.lower()
    except Exception:
        kind = ""
    bf16_tanh = ("v6" in kind) or ("v7" in kind)

    kernel = functools.partial(_vqvae_kernel, total_rows=N,
                               compute_recon=(Din == Dout),
                               bf16_tanh=bf16_tanh)

    compressed_flat, partials = pl.pallas_call(
        kernel,
        grid=(num_tiles,),
        in_specs=[x_spec] + w_specs + [sc_spec],
        out_specs=out_specs,
        out_shape=out_shape,
        compiler_params=pltpu.CompilerParams(
            dimension_semantics=("parallel",),
            vmem_limit_bytes=32 * 1024 * 1024),
    )(x_flat, *w_args, sc)

    # Reduce per-tile partial sums into the module's scalar vq_loss.
    sse_q = jnp.sum(partials[:, 0, 0])
    mse_q = sse_q / float(N * latent)        # == commitment == codebook loss
    if Din == Dout:
        recon = jnp.sum(partials[:, 1, 0]) / float(N * Dout)  # mse(compressed, x)
    else:
        recon = mse_q                        # F.mse_loss(z_q, z_e)
    vq_loss = 2.0 * mse_q + recon            # consistency_loss = 0 (no projection)

    return compressed_flat.reshape(B, S, Dout), vq_loss


def init_params(key, input_dim, output_dim, num_embeddings):
    bottleneck = min(input_dim, output_dim) // 2
    latent = bottleneck // 2
    ks = jax.random.split(key, 8)

    def lin(k, din, dout):
        kw, kb = jax.random.split(k)
        w = jax.random.normal(kw, (din, dout), jnp.float32) / jnp.sqrt(
            jnp.float32(din))
        b = 0.01 * jax.random.normal(kb, (1, dout), jnp.float32)
        return w, b

    ew1, eb1 = lin(ks[0], input_dim, bottleneck)
    ew2, eb2 = lin(ks[1], bottleneck, bottleneck)
    muw, mub = lin(ks[2], bottleneck, latent)
    dw1, db1 = lin(ks[3], latent, bottleneck)
    dw2, db2 = lin(ks[4], bottleneck, bottleneck)
    dw3, db3 = lin(ks[5], bottleneck, output_dim)
    codebook = jax.random.normal(ks[6], (latent, num_embeddings), jnp.float32)
    scales = jnp.ones((4,), jnp.float32)  # ScaledTanh scale params (init 1.0)

    return dict(enc_w1=ew1, enc_b1=eb1, enc_w2=ew2, enc_b2=eb2,
                mu_w=muw, mu_b=mub, codebook=codebook,
                dec_w1=dw1, dec_b1=db1, dec_w2=dw2, dec_b2=db2,
                dec_w3=dw3, dec_b3=db3, scales=scales)


if __name__ == "__main__":
    key = jax.random.PRNGKey(0)
    kx, kp = jax.random.split(key)

    B, S = 2, 8
    input_dim = output_dim = 64       # -> bottleneck 32, latent 16
    num_embeddings = 128

    params = init_params(kp, input_dim, output_dim, num_embeddings)
    x = jax.random.normal(kx, (B, S, input_dim), jnp.float32)

    compressed, vq_loss = praxis_vqvae_forward(x, params)
    jax.block_until_ready((compressed, vq_loss))

    assert compressed.shape == (B, S, output_dim)
    assert compressed.dtype == jnp.float32
    assert vq_loss.shape == ()
    assert bool(jnp.isfinite(vq_loss))
    assert bool(jnp.all(jnp.isfinite(compressed)))
    print("KERNEL_OK")
</pallas_src>

<mosaic_0001>
module attributes {stable_mosaic.version = 11 : i64} {
  func.func @_vqvae_kernel(%arg0: i32, %arg1: memref<8x64xf32, #tpu.memory_space<vmem>>, %arg2: memref<64x32xbf16, #tpu.memory_space<vmem>>, %arg3: memref<1x32xf32, #tpu.memory_space<vmem>>, %arg4: memref<32x32xbf16, #tpu.memory_space<vmem>>, %arg5: memref<1x32xf32, #tpu.memory_space<vmem>>, %arg6: memref<32x16xbf16, #tpu.memory_space<vmem>>, %arg7: memref<1x16xf32, #tpu.memory_space<vmem>>, %arg8: memref<17x128xbf16, #tpu.memory_space<vmem>>, %arg9: memref<16x128xf32, #tpu.memory_space<vmem>>, %arg10: memref<16x32xbf16, #tpu.memory_space<vmem>>, %arg11: memref<1x32xf32, #tpu.memory_space<vmem>>, %arg12: memref<32x32xbf16, #tpu.memory_space<vmem>>, %arg13: memref<1x32xf32, #tpu.memory_space<vmem>>, %arg14: memref<32x64xbf16, #tpu.memory_space<vmem>>, %arg15: memref<1x64xf32, #tpu.memory_space<vmem>>, %arg16: memref<8xf32, #tpu.memory_space<smem>>, %arg17: memref<8x64xf32, #tpu.memory_space<vmem>>, %arg18: memref<1x8x128xf32, #tpu.memory_space<vmem>>) attributes {dimension_semantics = [#tpu.dimension_semantics<parallel>], iteration_bounds = array<i64: 2>, scalar_prefetch = 0 : i64, scratch_operands = 0 : i64, tpu.core_type = #tpu.core_type<tc>, window_params = [{transform_indices = @transform_0, window_bounds = array<i64: 8, 64>}, {pipeline_mode = #tpu.pipeline_mode<synchronous>, transform_indices = @transform_1, window_bounds = array<i64: 64, 32>}, {pipeline_mode = #tpu.pipeline_mode<synchronous>, transform_indices = @transform_2, window_bounds = array<i64: 1, 32>}, {pipeline_mode = #tpu.pipeline_mode<synchronous>, transform_indices = @transform_3, window_bounds = array<i64: 32, 32>}, {pipeline_mode = #tpu.pipeline_mode<synchronous>, transform_indices = @transform_4, window_bounds = array<i64: 1, 32>}, {pipeline_mode = #tpu.pipeline_mode<synchronous>, transform_indices = @transform_5, window_bounds = array<i64: 32, 16>}, {pipeline_mode = #tpu.pipeline_mode<synchronous>, transform_indices = @transform_6, window_bounds = array<i64: 1, 16>}, {pipeline_mode = #tpu.pipeline_mode<synchronous>, transform_indices = @transform_7, window_bounds = array<i64: 17, 128>}, {pipeline_mode = #tpu.pipeline_mode<synchronous>, transform_indices = @transform_8, window_bounds = array<i64: 16, 128>}, {pipeline_mode = #tpu.pipeline_mode<synchronous>, transform_indices = @transform_9, window_bounds = array<i64: 16, 32>}, {pipeline_mode = #tpu.pipeline_mode<synchronous>, transform_indices = @transform_10, window_bounds = array<i64: 1, 32>}, {pipeline_mode = #tpu.pipeline_mode<synchronous>, transform_indices = @transform_11, window_bounds = array<i64: 32, 32>}, {pipeline_mode = #tpu.pipeline_mode<synchronous>, transform_indices = @transform_12, window_bounds = array<i64: 1, 32>}, {pipeline_mode = #tpu.pipeline_mode<synchronous>, transform_indices = @transform_13, window_bounds = array<i64: 32, 64>}, {pipeline_mode = #tpu.pipeline_mode<synchronous>, transform_indices = @transform_14, window_bounds = array<i64: 1, 64>}, {transform_indices = @transform_15, window_bounds = array<i64: 8>}, {transform_indices = @transform_16, window_bounds = array<i64: 8, 64>}, {transform_indices = @transform_17, window_bounds = array<i64: 1, 8, 128>}]} {
    %c8_i32 = arith.constant 8 : i32
    %0 = arith.muli %arg0, %c8_i32 : i32
    %c0 = arith.constant 0 : index
    %1 = memref.load %arg16[%c0] : memref<8xf32, #tpu.memory_space<smem>>
    %c1 = arith.constant 1 : index
    %2 = memref.load %arg16[%c1] : memref<8xf32, #tpu.memory_space<smem>>
    %c2 = arith.constant 2 : index
    %3 = memref.load %arg16[%c2] : memref<8xf32, #tpu.memory_space<smem>>
    %c3 = arith.constant 3 : index
    %4 = memref.load %arg16[%c3] : memref<8xf32, #tpu.memory_space<smem>>
    %c4 = arith.constant 4 : index
    %5 = memref.load %arg16[%c4] : memref<8xf32, #tpu.memory_space<smem>>
    %c5 = arith.constant 5 : index
    %6 = memref.load %arg16[%c5] : memref<8xf32, #tpu.memory_space<smem>>
    %c6 = arith.constant 6 : index
    %7 = memref.load %arg16[%c6] : memref<8xf32, #tpu.memory_space<smem>>
    %c7 = arith.constant 7 : index
    %8 = memref.load %arg16[%c7] : memref<8xf32, #tpu.memory_space<smem>>
    %c0_0 = arith.constant 0 : index
    %c0_1 = arith.constant 0 : index
    %9 = vector.load %arg1[%c0_0, %c0_1] : memref<8x64xf32, #tpu.memory_space<vmem>>, vector<8x64xf32>
    %10 = arith.truncf %9 : vector<8x64xf32> to vector<8x64xbf16>
    %c0_2 = arith.constant 0 : index
    %c0_3 = arith.constant 0 : index
    %11 = vector.load %arg2[%c0_2, %c0_3] : memref<64x32xbf16, #tpu.memory_space<vmem>>, vector<64x32xbf16>
    %cst = arith.constant dense<0.000000e+00> : vector<8x32xf32>
    %12 = tpu.matmul %10, %11, %cst {dimension_numbers = #tpu.dot_dimension_numbers<[1], [0], [0], [1], [0, 0, 1, 1], [], []>} : vector<8x64xbf16>, vector<64x32xbf16>, vector<8x32xf32> -> vector<8x32xf32>
    %c0_4 = arith.constant 0 : index
    %c0_5 = arith.constant 0 : index
    %13 = vector.load %arg3[%c0_4, %c0_5] : memref<1x32xf32, #tpu.memory_space<vmem>>, vector<1x32xf32>
    %14 = vector.broadcast %13 : vector<1x32xf32> to vector<8x32xf32>
    %15 = arith.addf %12, %14 : vector<8x32xf32>
    %16 = vector.broadcast %5 : f32 to vector<8x32xf32>
    %17 = arith.mulf %15, %16 : vector<8x32xf32>
    %18 = math.tanh %17 : vector<8x32xf32>
    %19 = vector.broadcast %1 : f32 to vector<8x32xf32>
    %20 = arith.mulf %18, %19 : vector<8x32xf32>
    %21 = arith.truncf %20 : vector<8x32xf32> to vector<8x32xbf16>
    %c0_6 = arith.constant 0 : index
    %c0_7 = arith.constant 0 : index
    %22 = vector.load %arg4[%c0_6, %c0_7] : memref<32x32xbf16, #tpu.memory_space<vmem>>, vector<32x32xbf16>
    %cst_8 = arith.constant dense<0.000000e+00> : vector<8x32xf32>
    %23 = tpu.matmul %21, %22, %cst_8 {dimension_numbers = #tpu.dot_dimension_numbers<[1], [0], [0], [1], [0, 0, 1, 1], [], []>} : vector<8x32xbf16>, vector<32x32xbf16>, vector<8x32xf32> -> vector<8x32xf32>
    %c0_9 = arith.constant 0 : index
    %c0_10 = arith.constant 0 : index
    %24 = vector.load %arg5[%c0_9, %c0_10] : memref<1x32xf32, #tpu.memory_space<vmem>>, vector<1x32xf32>
    %25 = vector.broadcast %24 : vector<1x32xf32> to vector<8x32xf32>
    %26 = arith.addf %23, %25 : vector<8x32xf32>
    %27 = vector.broadcast %6 : f32 to vector<8x32xf32>
    %28 = arith.mulf %26, %27 : vector<8x32xf32>
    %29 = math.tanh %28 : vector<8x32xf32>
    %30 = vector.broadcast %2 : f32 to vector<8x32xf32>
    %31 = arith.mulf %29, %30 : vector<8x32xf32>
    %32 = arith.truncf %31 : vector<8x32xf32> to vector<8x32xbf16>
    %c0_11 = arith.constant 0 : index
    %c0_12 = arith.constant 0 : index
    %33 = vector.load %arg6[%c0_11, %c0_12] : memref<32x16xbf16, #tpu.memory_space<vmem>>, vector<32x16xbf16>
    %cst_13 = arith.constant dense<0.000000e+00> : vector<8x16xf32>
    %34 = tpu.matmul %32, %33, %cst_13 {dimension_numbers = #tpu.dot_dimension_numbers<[1], [0], [0], [1], [0, 0, 1, 1], [], []>} : vector<8x32xbf16>, vector<32x16xbf16>, vector<8x16xf32> -> vector<8x16xf32>
    %c0_14 = arith.constant 0 : index
    %c0_15 = arith.constant 0 : index
    %35 = vector.load %arg7[%c0_14, %c0_15] : memref<1x16xf32, #tpu.memory_space<vmem>>, vector<1x16xf32>
    %36 = vector.broadcast %35 : vector<1x16xf32> to vector<8x16xf32>
    %37 = arith.addf %34, %36 : vector<8x16xf32>
    %c0_16 = arith.constant 0 : index
    %c0_17 = arith.constant 0 : index
    %38 = vector.load %arg8[%c0_16, %c0_17] : memref<17x128xbf16, #tpu.memory_space<vmem>>, vector<17x128xbf16>
    %cst_18 = arith.constant 1.000000e+00 : f32
    %39 = vector.broadcast %cst_18 : f32 to vector<8x1xf32>
    %cst_19 = arith.constant -2.000000e+00 : f32
    %40 = vector.broadcast %cst_19 : f32 to vector<8x16xf32>
    %41 = arith.mulf %37, %40 : vector<8x16xf32>
    %42 = tpu.concatenate %41, %39 in 1 : vector<8x16xf32>, vector<8x1xf32> -> vector<8x17xf32>
    %43 = arith.truncf %42 : vector<8x17xf32> to vector<8x17xbf16>
    %cst_20 = arith.constant dense<0.000000e+00> : vector<8x128xf32>
    %44 = tpu.matmul %43, %38, %cst_20 {dimension_numbers = #tpu.dot_dimension_numbers<[1], [0], [0], [1], [0, 0, 1, 1], [], []>} : vector<8x17xbf16>, vector<17x128xbf16>, vector<8x128xf32> -> vector<8x128xf32>
    %cst_21 = arith.constant dense<0x7F800000> : vector<8xf32>
    %45 = vector.multi_reduction <minimumf>, %44, %cst_21 [1] : vector<8x128xf32> to vector<8xf32>
    %46 = vector.shape_cast %45 : vector<8xf32> to vector<8x1xf32>
    %47 = tpu.iota {dimensions = array<i32: 1>} : vector<8x128xi32>
    %48 = vector.broadcast %46 : vector<8x1xf32> to vector<8x128xf32>
    %49 = arith.cmpf ole, %44, %48 : vector<8x128xf32>
    %c128_i32 = arith.constant 128 : i32
    %50 = vector.broadcast %c128_i32 : i32 to vector<8x128xi32>
    %51 = arith.select %49, %47, %50 : vector<8x128xi1>, vector<8x128xi32>
    %cst_22 = arith.constant dense<2147483647> : vector<8xi32>
    %52 = vector.multi_reduction <minsi>, %51, %cst_22 [1] : vector<8x128xi32> to vector<8xi32>
    %53 = vector.shape_cast %52 : vector<8xi32> to vector<8x1xi32>
    %54 = vector.broadcast %53 : vector<8x1xi32> to vector<8x128xi32>
    %55 = arith.cmpi eq, %47, %54 : vector<8x128xi32>
    %56 = arith.extui %55 : vector<8x128xi1> to vector<8x128xi32>
    %57 = arith.sitofp %56 : vector<8x128xi32> to vector<8x128xf32>
    %c0_23 = arith.constant 0 : index
    %c0_24 = arith.constant 0 : index
    %58 = vector.load %arg9[%c0_23, %c0_24] : memref<16x128xf32, #tpu.memory_space<vmem>>, vector<16x128xf32>
    %cst_25 = arith.constant dense<0.000000e+00> : vector<8x16xf32>
    %59 = tpu.matmul %57, %58, %cst_25 {dimension_numbers = #tpu.dot_dimension_numbers<[1], [1], [0], [0], [0, 0, 1, 0], [], []>} : vector<8x128xf32>, vector<16x128xf32>, vector<8x16xf32> -> vector<8x16xf32>
    %60 = arith.truncf %59 : vector<8x16xf32> to vector<8x16xbf16>
    %c0_26 = arith.constant 0 : index
    %c0_27 = arith.constant 0 : index
    %61 = vector.load %arg10[%c0_26, %c0_27] : memref<16x32xbf16, #tpu.memory_space<vmem>>, vector<16x32xbf16>
    %cst_28 = arith.constant dense<0.000000e+00> : vector<8x32xf32>
    %62 = tpu.matmul %60, %61, %cst_28 {dimension_numbers = #tpu.dot_dimension_numbers<[1], [0], [0], [1], [0, 0, 1, 1], [], []>} : vector<8x16xbf16>, vector<16x32xbf16>, vector<8x32xf32> -> vector<8x32xf32>
    %c0_29 = arith.constant 0 : index
    %c0_30 = arith.constant 0 : index
    %63 = vector.load %arg11[%c0_29, %c0_30] : memref<1x32xf32, #tpu.memory_space<vmem>>, vector<1x32xf32>
    %64 = vector.broadcast %63 : vector<1x32xf32> to vector<8x32xf32>
    %65 = arith.addf %62, %64 : vector<8x32xf32>
    %66 = vector.broadcast %7 : f32 to vector<8x32xf32>
    %67 = arith.mulf %65, %66 : vector<8x32xf32>
    %68 = math.tanh %67 : vector<8x32xf32>
    %69 = vector.broadcast %3 : f32 to vector<8x32xf32>
    %70 = arith.mulf %68, %69 : vector<8x32xf32>
    %71 = arith.truncf %70 : vector<8x32xf32> to vector<8x32xbf16>
    %c0_31 = arith.constant 0 : index
    %c0_32 = arith.constant 0 : index
    %72 = vector.load %arg12[%c0_31, %c0_32] : memref<32x32xbf16, #tpu.memory_space<vmem>>, vector<32x32xbf16>
    %cst_33 = arith.constant dense<0.000000e+00> : vector<8x32xf32>
    %73 = tpu.matmul %71, %72, %cst_33 {dimension_numbers = #tpu.dot_dimension_numbers<[1], [0], [0], [1], [0, 0, 1, 1], [], []>} : vector<8x32xbf16>, vector<32x32xbf16>, vector<8x32xf32> -> vector<8x32xf32>
    %c0_34 = arith.constant 0 : index
    %c0_35 = arith.constant 0 : index
    %74 = vector.load %arg13[%c0_34, %c0_35] : memref<1x32xf32, #tpu.memory_space<vmem>>, vector<1x32xf32>
    %75 = vector.broadcast %74 : vector<1x32xf32> to vector<8x32xf32>
    %76 = arith.addf %73, %75 : vector<8x32xf32>
    %77 = vector.broadcast %8 : f32 to vector<8x32xf32>
    %78 = arith.mulf %76, %77 : vector<8x32xf32>
    %79 = math.tanh %78 : vector<8x32xf32>
    %80 = vector.broadcast %4 : f32 to vector<8x32xf32>
    %81 = arith.mulf %79, %80 : vector<8x32xf32>
    %82 = arith.truncf %81 : vector<8x32xf32> to vector<8x32xbf16>
    %c0_36 = arith.constant 0 : index
    %c0_37 = arith.constant 0 : index
    %83 = vector.load %arg14[%c0_36, %c0_37] : memref<32x64xbf16, #tpu.memory_space<vmem>>, vector<32x64xbf16>
    %cst_38 = arith.constant dense<0.000000e+00> : vector<8x64xf32>
    %84 = tpu.matmul %82, %83, %cst_38 {dimension_numbers = #tpu.dot_dimension_numbers<[1], [0], [0], [1], [0, 0, 1, 1], [], []>} : vector<8x32xbf16>, vector<32x64xbf16>, vector<8x64xf32> -> vector<8x64xf32>
    %c0_39 = arith.constant 0 : index
    %c0_40 = arith.constant 0 : index
    %85 = vector.load %arg15[%c0_39, %c0_40] : memref<1x64xf32, #tpu.memory_space<vmem>>, vector<1x64xf32>
    %86 = vector.broadcast %85 : vector<1x64xf32> to vector<8x64xf32>
    %87 = arith.addf %84, %86 : vector<8x64xf32>
    %c0_41 = arith.constant 0 : index
    %c0_42 = arith.constant 0 : index
    %88 = vector.load %arg17[%c0_41, %c0_42] : memref<8x64xf32, #tpu.memory_space<vmem>>, vector<8x64xf32>
    tpu.vector_store %arg17[%c0_41, %c0_42], %87 {strides = array<i32>} : memref<8x64xf32, #tpu.memory_space<vmem>>, vector<8x64xf32>,
    %89 = tpu.iota {dimensions = array<i32: 0>} : vector<8x1xi32>
    %90 = vector.broadcast %0 : i32 to vector<8x1xi32>
    %91 = arith.addi %89, %90 : vector<8x1xi32>
    %c16_i32 = arith.constant 16 : i32
    %92 = vector.broadcast %c16_i32 : i32 to vector<8x1xi32>
    %93 = arith.cmpi slt, %91, %92 : vector<8x1xi32>
    %94 = arith.subf %59, %37 : vector<8x16xf32>
    %cst_43 = arith.constant 0.000000e+00 : f32
    %95 = vector.shape_cast %93 : vector<8x1xi1> to vector<8x1xi1>
    %96 = vector.broadcast %95 : vector<8x1xi1> to vector<8x16xi1>
    %97 = vector.broadcast %cst_43 : f32 to vector<8x16xf32>
    %98 = arith.select %96, %94, %97 : vector<8x16xi1>, vector<8x16xf32>
    %99 = arith.mulf %98, %98 : vector<8x16xf32>
    %100 = vector.shape_cast %99 : vector<8x16xf32> to vector<1x8x16xf32>
    %cst_44 = arith.constant dense<0.000000e+00> : vector<1xf32>
    %101 = vector.multi_reduction <add>, %100, %cst_44 [1, 2] : vector<1x8x16xf32> to vector<1xf32>
    %102 = vector.shape_cast %101 : vector<1xf32> to vector<1x1x1xf32>
    %103 = vector.extract %102[0, 0, 0] : f32 from vector<1x1x1xf32>
    %c0_45 = arith.constant 0 : index
    %c0_46 = arith.constant 0 : index
    %104 = vector.load %arg1[%c0_45, %c0_46] : memref<8x64xf32, #tpu.memory_space<vmem>>, vector<8x64xf32>
    %105 = arith.subf %87, %104 : vector<8x64xf32>
    %cst_47 = arith.constant 0.000000e+00 : f32
    %106 = vector.shape_cast %93 : vector<8x1xi1> to vector<8x1xi1>
    %107 = vector.broadcast %106 : vector<8x1xi1> to vector<8x64xi1>
    %108 = vector.broadcast %cst_47 : f32 to vector<8x64xf32>
    %109 = arith.select %107, %105, %108 : vector<8x64xi1>, vector<8x64xf32>
    %110 = arith.mulf %109, %109 : vector<8x64xf32>
    %111 = vector.shape_cast %110 : vector<8x64xf32> to vector<1x8x64xf32>
    %cst_48 = arith.constant dense<0.000000e+00> : vector<1xf32>
    %112 = vector.multi_reduction <add>, %111, %cst_48 [1, 2] : vector<1x8x64xf32> to vector<1xf32>
    %113 = vector.shape_cast %112 : vector<1xf32> to vector<1x1x1xf32>
    %114 = vector.extract %113[0, 0, 0] : f32 from vector<1x1x1xf32>
    %115 = tpu.iota {dimensions = array<i32: 1>} : vector<1x8x128xi32>
    %c0_i32 = arith.constant 0 : i32
    %116 = vector.broadcast %c0_i32 : i32 to vector<1x8x128xi32>
    %117 = arith.cmpi eq, %115, %116 : vector<1x8x128xi32>
    %c1_i32 = arith.constant 1 : i32
    %118 = vector.broadcast %c1_i32 : i32 to vector<1x8x128xi32>
    %119 = arith.cmpi eq, %115, %118 : vector<1x8x128xi32>
    %cst_49 = arith.constant 0.000000e+00 : f32
    %120 = vector.broadcast %114 : f32 to vector<1x8x128xf32>
    %121 = vector.broadcast %cst_49 : f32 to vector<1x8x128xf32>
    %122 = arith.select %119, %120, %121 : vector<1x8x128xi1>, vector<1x8x128xf32>
    %123 = vector.broadcast %103 : f32 to vector<1x8x128xf32>
    %124 = arith.select %117, %123, %122 : vector<1x8x128xi1>, vector<1x8x128xf32>
    %c0_50 = arith.constant 0 : index
    %c0_51 = arith.constant 0 : index
    %c0_52 = arith.constant 0 : index
    %125 = vector.load %arg18[%c0_50, %c0_51, %c0_52] : memref<1x8x128xf32, #tpu.memory_space<vmem>>, vector<1x8x128xf32>
    tpu.vector_store %arg18[%c0_50, %c0_51, %c0_52], %124 {strides = array<i32>} : memref<1x8x128xf32, #tpu.memory_space<vmem>>, vector<1x8x128xf32>,
    return
  }
  func.func @transform_0(%arg0: i32) -> (i32, i32) {
    %c0_i32 = arith.constant 0 : i32
    %c0_i32_0 = arith.constant 0 : i32
    return %arg0, %c0_i32 : i32, i32
  }
  func.func @transform_1(%arg0: i32) -> (i32, i32) {
    %c0_i32 = arith.constant 0 : i32
    %c0_i32_0 = arith.constant 0 : i32
    %c0_i32_1 = arith.constant 0 : i32
    return %c0_i32, %c0_i32_0 : i32, i32
  }
  func.func @transform_2(%arg0: i32) -> (i32, i32) {
    %c0_i32 = arith.constant 0 : i32
    %c0_i32_0 = arith.constant 0 : i32
    %c0_i32_1 = arith.constant 0 : i32
    return %c0_i32, %c0_i32_0 : i32, i32
  }
  func.func @transform_3(%arg0: i32) -> (i32, i32) {
    %c0_i32 = arith.constant 0 : i32
    %c0_i32_0 = arith.constant 0 : i32
    %c0_i32_1 = arith.constant 0 : i32
    return %c0_i32, %c0_i32_0 : i32, i32
  }
  func.func @transform_4(%arg0: i32) -> (i32, i32) {
    %c0_i32 = arith.constant 0 : i32
    %c0_i32_0 = arith.constant 0 : i32
    %c0_i32_1 = arith.constant 0 : i32
    return %c0_i32, %c0_i32_0 : i32, i32
  }
  func.func @transform_5(%arg0: i32) -> (i32, i32) {
    %c0_i32 = arith.constant 0 : i32
    %c0_i32_0 = arith.constant 0 : i32
    %c0_i32_1 = arith.constant 0 : i32
    return %c0_i32, %c0_i32_0 : i32, i32
  }
  func.func @transform_6(%arg0: i32) -> (i32, i32) {
    %c0_i32 = arith.constant 0 : i32
    %c0_i32_0 = arith.constant 0 : i32
    %c0_i32_1 = arith.constant 0 : i32
    return %c0_i32, %c0_i32_0 : i32, i32
  }
  func.func @transform_7(%arg0: i32) -> (i32, i32) {
    %c0_i32 = arith.constant 0 : i32
    %c0_i32_0 = arith.constant 0 : i32
    %c0_i32_1 = arith.constant 0 : i32
    return %c0_i32, %c0_i32_0 : i32, i32
  }
  func.func @transform_8(%arg0: i32) -> (i32, i32) {
    %c0_i32 = arith.constant 0 : i32
    %c0_i32_0 = arith.constant 0 : i32
    %c0_i32_1 = arith.constant 0 : i32
    return %c0_i32, %c0_i32_0 : i32, i32
  }
  func.func @transform_9(%arg0: i32) -> (i32, i32) {
    %c0_i32 = arith.constant 0 : i32
    %c0_i32_0 = arith.constant 0 : i32
    %c0_i32_1 = arith.constant 0 : i32
    return %c0_i32, %c0_i32_0 : i32, i32
  }
  func.func @transform_10(%arg0: i32) -> (i32, i32) {
    %c0_i32 = arith.constant 0 : i32
    %c0_i32_0 = arith.constant 0 : i32
    %c0_i32_1 = arith.constant 0 : i32
    return %c0_i32, %c0_i32_0 : i32, i32
  }
  func.func @transform_11(%arg0: i32) -> (i32, i32) {
    %c0_i32 = arith.constant 0 : i32
    %c0_i32_0 = arith.constant 0 : i32
    %c0_i32_1 = arith.constant 0 : i32
    return %c0_i32, %c0_i32_0 : i32, i32
  }
  func.func @transform_12(%arg0: i32) -> (i32, i32) {
    %c0_i32 = arith.constant 0 : i32
    %c0_i32_0 = arith.constant 0 : i32
    %c0_i32_1 = arith.constant 0 : i32
    return %c0_i32, %c0_i32_0 : i32, i32
  }
  func.func @transform_13(%arg0: i32) -> (i32, i32) {
    %c0_i32 = arith.constant 0 : i32
    %c0_i32_0 = arith.constant 0 : i32
    %c0_i32_1 = arith.constant 0 : i32
    return %c0_i32, %c0_i32_0 : i32, i32
  }
  func.func @transform_14(%arg0: i32) -> (i32, i32) {
    %c0_i32 = arith.constant 0 : i32
    %c0_i32_0 = arith.constant 0 : i32
    %c0_i32_1 = arith.constant 0 : i32
    return %c0_i32, %c0_i32_0 : i32, i32
  }
  func.func @transform_15(%arg0: i32) -> i32 {
    %c0_i32 = arith.constant 0 : i32
    %c0_i32_0 = arith.constant 0 : i32
    return %c0_i32 : i32
  }
  func.func @transform_16(%arg0: i32) -> (i32, i32) {
    %c0_i32 = arith.constant 0 : i32
    %c0_i32_0 = arith.constant 0 : i32
    return %arg0, %c0_i32 : i32, i32
  }
  func.func @transform_17(%arg0: i32) -> (i32, i32, i32) {
    %c0_i32 = arith.constant 0 : i32
    %c0_i32_0 = arith.constant 0 : i32
    %c0_i32_1 = arith.constant 0 : i32
    return %arg0, %c0_i32, %c0_i32_0 : i32, i32, i32
  }
}

</mosaic_0001>

<llo_original>
// kernel: tpu_custom_call.1
$region0: #{tpu_custom_call.1}
  #allocation0 [shape = 'u32[]', space=smem, size = 0x4, offset = 0x4, fixed_abs, tag = 'smem constant byte address 0x4 - core index']
  #allocation1 [shape = 'u32[144,128]{1,0:T(1,128)}', space=vmem, size = 0x12000, scoped, tag = 'internal scratch']
  %s0 = inlined_call_operand.vmem [shape: f32[16,64], index: 0, kind: input, shape index: {}]
  %s1 = inlined_call_operand.vmem [shape: bf16[64,32], index: 1, kind: input, shape index: {}]
  %s2 = inlined_call_operand.vmem [shape: f32[1,32], index: 2, kind: input, shape index: {}]
  %s3 = inlined_call_operand.vmem [shape: bf16[32,32], index: 3, kind: input, shape index: {}]
  %s4 = inlined_call_operand.vmem [shape: f32[1,32], index: 4, kind: input, shape index: {}]
  %s5 = inlined_call_operand.vmem [shape: bf16[32,16], index: 5, kind: input, shape index: {}]
  %s6 = inlined_call_operand.hbm [shape: f32[1,16], index: 6, kind: input, shape index: {}]
  %s7 = inlined_call_operand.hbm [shape: bf16[17,128], index: 7, kind: input, shape index: {}]
  %s8 = inlined_call_operand.vmem [shape: f32[16,128], index: 8, kind: input, shape index: {}]
  %s9 = inlined_call_operand.vmem [shape: bf16[16,32], index: 9, kind: input, shape index: {}]
  %s10 = inlined_call_operand.vmem [shape: f32[1,32], index: 10, kind: input, shape index: {}]
  %s11 = inlined_call_operand.vmem [shape: bf16[32,32], index: 11, kind: input, shape index: {}]
  %s12 = inlined_call_operand.vmem [shape: f32[1,32], index: 12, kind: input, shape index: {}]
  %s13 = inlined_call_operand.vmem [shape: bf16[32,64], index: 13, kind: input, shape index: {}]
  %s14 = inlined_call_operand.vmem [shape: f32[1,64], index: 14, kind: input, shape index: {}]
  %s15 = inlined_call_operand.vmem [shape: f32[8], index: 15, kind: input, shape index: {}]
  %s16 = inlined_call_operand.hbm [shape: f32[16,64], index: 16, kind: output, shape index: {0}]
  %s17 = inlined_call_operand.hbm [shape: f32[2,8,128], index: 17, kind: output, shape index: {1}]
  %18 = xla_tuple %s16, %s17
  %s19 = sld [smem:[#allocation0]]
  $region117: #{tpu_custom_call.1} parent=0
    _
  %s21 = ssub.s32 1, %s19
  %s22 = scalar_select 0, %s21, %s19
  $region1: #{tpu_custom_call.1} parent=0
    #allocation2 [shape = 'u8[512]{0}', space=vmem, size = 0x400, scoped, tag = 'input window, operand 6, single buffered']
    #allocation3 [shape = 's32[2]{0}', space=sflag, size = 0x8, scoped, tag = 'scoped memory for tpu_custom_call.1']
    #allocation4 [shape = 's32[2]{0}', space=sflag, size = 0x8, scoped, tag = 'scoped memory for tpu_custom_call.1']
    #allocation5 [shape = 's32[2]{0}', space=sflag, size = 0x8, scoped, tag = 'scoped memory for tpu_custom_call.1']
    #allocation6 [shape = 'u8[6144]{0}', space=vmem, size = 0x1800, scoped, tag = 'input window, operand 7, single buffered']
    #allocation7 [shape = 's32[1]{0}', space=sflag, size = 0x4, scoped, tag = 'scoped memory for tpu_custom_call.1']
    #allocation8 [shape = 'u8[512]{0}', space=smem, size = 0x200, scoped, tag = 'input window, operand 15, single buffered']
    #allocation9 [shape = 'u8[8192]{0}', space=vmem, size = 0x2000, scoped, tag = 'output window, operand 0']
    #allocation10 [shape = 'u8[8192]{0}', space=vmem, size = 0x2000, scoped, tag = 'output window, operand 1']
    #allocation11 [shape = 's32[2]{0}', space=sflag, size = 0x8, scoped, tag = 'scoped memory for tpu_custom_call.1']
    %23 = vsyncpa [#allocation3], 0
    %24 = vsyncpa [#allocation7], 0
    %25 = vsyncpa [#allocation5], 0
    %26 = vsyncpa [#allocation4], 0
    %s27 = scalar_lea.sflag [#allocation4], 1
    %28 = vsyncpa %s27, 0
    %29 = vsyncpa [#allocation11], 0
    %s30 = scalar_lea.sflag [#allocation11], 1
    %31 = vsyncpa %s30, 0
    loop: start=0, step=1, limit=4
    $region2: #{tpu_custom_call.1} parent=1 // loop_pre_header
      _
    $region3: #{tpu_custom_call.1} parent=1 // loop_header
      %s33 = sphi 0, %s37
      %p34 = scmp.ge.s32.totalorder %s33, 4
      %s43 = sphi 0, %s45
      %s46 = sphi 0, %s43
      %s47 = sphi 0, %s46
      %s63 = sphi 0, %s47
      %s67 = sphi 0, %s67
      %s69 = sphi 0, %s67
      %s70 = sphi 0, %s69
      %s84 = sphi 0, %s70
      %s88 = sphi 0, %s88
      %s90 = sphi 0, %s88
      %s91 = sphi 0, %s90
      %s105 = sphi 0, %s91
      %s109 = sphi 0, %s109
      %s111 = sphi 0, %s109
      %s112 = sphi 0, %s111
      %s126 = sphi 0, %s112
      %s130 = sphi 0, %s130
      %s132 = sphi 0, %s130
      %s133 = sphi 0, %s132
      %s147 = sphi 0, %s133
      %s151 = sphi 0, %s151
      %s153 = sphi 0, %s151
      %s154 = sphi 0, %s153
      %s168 = sphi 0, %s154
      %s172 = sphi 0, %s172
      %s174 = sphi 0, %s172
      %s175 = sphi 0, %s174
      %s189 = sphi 0, %s175
      %s193 = sphi 0, %s193
      %s195 = sphi 0, %s193
      %s196 = sphi 0, %s195
      %s210 = sphi 0, %s196
      %s214 = sphi 0, %s214
      %s216 = sphi 0, %s214
      %s217 = sphi 0, %s216
      %s231 = sphi 0, %s217
      %s235 = sphi 0, %s235
      %s237 = sphi 0, %s235
      %s238 = sphi 0, %s237
      %s252 = sphi 0, %s238
      %s256 = sphi 0, %s256
      %s258 = sphi 0, %s256
      %s259 = sphi 0, %s258
      %s273 = sphi 0, %s259
      %s277 = sphi 0, %s277
      %s279 = sphi 0, %s277
      %s280 = sphi 0, %s279
      %s294 = sphi 0, %s280
      %s298 = sphi 0, %s298
      %s300 = sphi 0, %s298
      %s301 = sphi 0, %s300
      %s315 = sphi 0, %s301
      %s319 = sphi 0, %s319
      %s321 = sphi 0, %s319
      %s322 = sphi 0, %s321
      %s336 = sphi 0, %s322
      %s340 = sphi 0, %s340
      %s342 = sphi 0, %s340
      %s343 = sphi 0, %s342
      %s357 = sphi 0, %s343
      %s361 = sphi 0, %s361
      %s363 = sphi 0, %s361
      %s364 = sphi 0, %s363
      %s378 = sphi 0, %s364
      %s384 = sphi 0, %s386
      %s387 = sphi 0, %s384
      %s388 = sphi 0, %s387
      %s404 = sphi 0, %s388
      %s410 = sphi 0, %s412
      %s413 = sphi 0, %s410
      %s414 = sphi 0, %s413
      %s430 = sphi 0, %s414
    $region4: #{tpu_custom_call.1} parent=1 // loop_header_branch
      %36 = sbr.rel (%p34) target = $region8
    $region5: #{tpu_custom_call.1} parent=1 // loop_body
      %s38 = ssub.s32 %s33, 1
      %s39 = ssub.s32 %s33, 2
      %s40 = sadd.s32 %s33, 1
      %s41 = ssub.s32 %s33, %s40
      %p42 = scmp.eq.s32.totalorder %s41, 0
      %s44 = sadd.s32 %s43, 1
      %s45 = scalar_select %p42, %s43, %s44
      %p48 = pneg %p42
      %p49 = scmp.eq.s32.totalorder %s33, 1
      %p50 = por %p48, %p49
      %p51 = scmp.ne.s32.totalorder %s43, %s46
      %p52 = scmp.eq.s32.totalorder %s33, 0
      %p53 = por %p51, %p52
      %p54 = scmp.ne.s32.totalorder %s43, %s46
      %p55 = scmp.eq.s32.totalorder %s38, 1
      %p56 = por %p54, %p55
      %p57 = scmp.ne.s32.totalorder %s46, %s47
      %p58 = scmp.eq.s32.totalorder %s38, 0
      %p59 = por %p57, %p58
      %p60 = scmp.ne.s32.totalorder %s46, %s47
      %p61 = scmp.eq.s32.totalorder %s39, 1
      %p62 = por %p60, %p61
      %p64 = scmp.ne.s32.totalorder %s47, %s63
      %p65 = scmp.eq.s32.totalorder %s39, 0
      %p66 = por %p64, %p65
      %s68 = sadd.s32 %s67, 1
      %p71 = scmp.eq.s32.totalorder %s33, 1
      %p72 = scmp.ne.s32.totalorder %s67, %s69
      %p73 = scmp.eq.s32.totalorder %s33, 0
      %p74 = por %p72, %p73
      %p75 = scmp.ne.s32.totalorder %s67, %s69
      %p76 = scmp.eq.s32.totalorder %s38, 1
      %p77 = por %p75, %p76
      %p78 = scmp.ne.s32.totalorder %s69, %s70
      %p79 = scmp.eq.s32.totalorder %s38, 0
      %p80 = por %p78, %p79
      %p81 = scmp.ne.s32.totalorder %s69, %s70
      %p82 = scmp.eq.s32.totalorder %s39, 1
      %p83 = por %p81, %p82
      %p85 = scmp.ne.s32.totalorder %s70, %s84
      %p86 = scmp.eq.s32.totalorder %s39, 0
      %p87 = por %p85, %p86
      %s89 = sadd.s32 %s88, 1
      %p92 = scmp.eq.s32.totalorder %s33, 1
      %p93 = scmp.ne.s32.totalorder %s88, %s90
      %p94 = scmp.eq.s32.totalorder %s33, 0
      %p95 = por %p93, %p94
      %p96 = scmp.ne.s32.totalorder %s88, %s90
      %p97 = scmp.eq.s32.totalorder %s38, 1
      %p98 = por %p96, %p97
      %p99 = scmp.ne.s32.totalorder %s90, %s91
      %p100 = scmp.eq.s32.totalorder %s38, 0
      %p101 = por %p99, %p100
      %p102 = scmp.ne.s32.totalorder %s90, %s91
      %p103 = scmp.eq.s32.totalorder %s39, 1
      %p104 = por %p102, %p103
      %p106 = scmp.ne.s32.totalorder %s91, %s105
      %p107 = scmp.eq.s32.totalorder %s39, 0
      %p108 = por %p106, %p107
      %s110 = sadd.s32 %s109, 1
      %p113 = scmp.eq.s32.totalorder %s33, 1
      %p114 = scmp.ne.s32.totalorder %s109, %s111
      %p115 = scmp.eq.s32.totalorder %s33, 0
      %p116 = por %p114, %p115
      %p117 = scmp.ne.s32.totalorder %s109, %s111
      %p118 = scmp.eq.s32.totalorder %s38, 1
      %p119 = por %p117, %p118
      %p120 = scmp.ne.s32.totalorder %s111, %s112
      %p121 = scmp.eq.s32.totalorder %s38, 0
      %p122 = por %p120, %p121
      %p123 = scmp.ne.s32.totalorder %s111, %s112
      %p124 = scmp.eq.s32.totalorder %s39, 1
      %p125 = por %p123, %p124
      %p127 = scmp.ne.s32.totalorder %s112, %s126
      %p128 = scmp.eq.s32.totalorder %s39, 0
      %p129 = por %p127, %p128
      %s131 = sadd.s32 %s130, 1
      %p134 = scmp.eq.s32.totalorder %s33, 1
      %p135 = scmp.ne.s32.totalorder %s130, %s132
      %p136 = scmp.eq.s32.totalorder %s33, 0
      %p137 = por %p135, %p136
      %p138 = scmp.ne.s32.totalorder %s130, %s132
      %p139 = scmp.eq.s32.totalorder %s38, 1
      %p140 = por %p138, %p139
      %p141 = scmp.ne.s32.totalorder %s132, %s133
      %p142 = scmp.eq.s32.totalorder %s38, 0
      %p143 = por %p141, %p142
      %p144 = scmp.ne.s32.totalorder %s132, %s133
      %p145 = scmp.eq.s32.totalorder %s39, 1
      %p146 = por %p144, %p145
      %p148 = scmp.ne.s32.totalorder %s133, %s147
      %p149 = scmp.eq.s32.totalorder %s39, 0
      %p150 = por %p148, %p149
      %s152 = sadd.s32 %s151, 1
      %p155 = scmp.eq.s32.totalorder %s33, 1
      %p156 = scmp.ne.s32.totalorder %s151, %s153
      %p157 = scmp.eq.s32.totalorder %s33, 0
      %p158 = por %p156, %p157
      %p159 = scmp.ne.s32.totalorder %s151, %s153
      %p160 = scmp.eq.s32.totalorder %s38, 1
      %p161 = por %p159, %p160
      %p162 = scmp.ne.s32.totalorder %s153, %s154
      %p163 = scmp.eq.s32.totalorder %s38, 0
      %p164 = por %p162, %p163
      %p165 = scmp.ne.s32.totalorder %s153, %s154
      %p166 = scmp.eq.s32.totalorder %s39, 1
      %p167 = por %p165, %p166
      %p169 = scmp.ne.s32.totalorder %s154, %s168
      %p170 = scmp.eq.s32.totalorder %s39, 0
      %p171 = por %p169, %p170
      %s173 = sadd.s32 %s172, 1
      %p176 = scmp.eq.s32.totalorder %s33, 1
      %p177 = scmp.ne.s32.totalorder %s172, %s174
      %p178 = scmp.eq.s32.totalorder %s33, 0
      %p179 = por %p177, %p178
      %p180 = scmp.ne.s32.totalorder %s172, %s174
      %p181 = scmp.eq.s32.totalorder %s38, 1
      %p182 = por %p180, %p181
      %p183 = scmp.ne.s32.totalorder %s174, %s175
      %p184 = scmp.eq.s32.totalorder %s38, 0
      %p185 = por %p183, %p184
      %p186 = scmp.ne.s32.totalorder %s174, %s175
      %p187 = scmp.eq.s32.totalorder %s39, 1
      %p188 = por %p186, %p187
      %p190 = scmp.ne.s32.totalorder %s175, %s189
      %p191 = scmp.eq.s32.totalorder %s39, 0
      %p192 = por %p190, %p191
      %s194 = sadd.s32 %s193, 1
      %p197 = scmp.eq.s32.totalorder %s33, 1
      %p198 = scmp.ne.s32.totalorder %s193, %s195
      %p199 = scmp.eq.s32.totalorder %s33, 0
      %p200 = por %p198, %p199
      %p201 = scmp.ne.s32.totalorder %s193, %s195
      %p202 = scmp.eq.s32.totalorder %s38, 1
      %p203 = por %p201, %p202
      %p204 = scmp.ne.s32.totalorder %s195, %s196
      %p205 = scmp.eq.s32.totalorder %s38, 0
      %p206 = por %p204, %p205
      %p207 = scmp.ne.s32.totalorder %s195, %s196
      %p208 = scmp.eq.s32.totalorder %s39, 1
      %p209 = por %p207, %p208
      %p211 = scmp.ne.s32.totalorder %s196, %s210
      %p212 = scmp.eq.s32.totalorder %s39, 0
      %p213 = por %p211, %p212
      %s215 = sadd.s32 %s214, 1
      %p218 = scmp.eq.s32.totalorder %s33, 1
      %p219 = scmp.ne.s32.totalorder %s214, %s216
      %p220 = scmp.eq.s32.totalorder %s33, 0
      %p221 = por %p219, %p220
      %p222 = scmp.ne.s32.totalorder %s214, %s216
      %p223 = scmp.eq.s32.totalorder %s38, 1
      %p224 = por %p222, %p223
      %p225 = scmp.ne.s32.totalorder %s216, %s217
      %p226 = scmp.eq.s32.totalorder %s38, 0
      %p227 = por %p225, %p226
      %p228 = scmp.ne.s32.totalorder %s216, %s217
      %p229 = scmp.eq.s32.totalorder %s39, 1
      %p230 = por %p228, %p229
      %p232 = scmp.ne.s32.totalorder %s217, %s231
      %p233 = scmp.eq.s32.totalorder %s39, 0
      %p234 = por %p232, %p233
      %s236 = sadd.s32 %s235, 1
      %p239 = scmp.eq.s32.totalorder %s33, 1
      %p240 = scmp.ne.s32.totalorder %s235, %s237
      %p241 = scmp.eq.s32.totalorder %s33, 0
      %p242 = por %p240, %p241
      %p243 = scmp.ne.s32.totalorder %s235, %s237
      %p244 = scmp.eq.s32.totalorder %s38, 1
      %p245 = por %p243, %p244
      %p246 = scmp.ne.s32.totalorder %s237, %s238
      %p247 = scmp.eq.s32.totalorder %s38, 0
      %p248 = por %p246, %p247
      %p249 = scmp.ne.s32.totalorder %s237, %s238
      %p250 = scmp.eq.s32.totalorder %s39, 1
      %p251 = por %p249, %p250
      %p253 = scmp.ne.s32.totalorder %s238, %s252
      %p254 = scmp.eq.s32.totalorder %s39, 0
      %p255 = por %p253, %p254
      %s257 = sadd.s32 %s256, 1
      %p260 = scmp.eq.s32.totalorder %s33, 1
      %p261 = scmp.ne.s32.totalorder %s256, %s258
      %p262 = scmp.eq.s32.totalorder %s33, 0
      %p263 = por %p261, %p262
      %p264 = scmp.ne.s32.totalorder %s256, %s258
      %p265 = scmp.eq.s32.totalorder %s38, 1
      %p266 = por %p264, %p265
      %p267 = scmp.ne.s32.totalorder %s258, %s259
      %p268 = scmp.eq.s32.totalorder %s38, 0
      %p269 = por %p267, %p268
      %p270 = scmp.ne.s32.totalorder %s258, %s259
      %p271 = scmp.eq.s32.totalorder %s39, 1
      %p272 = por %p270, %p271
      %p274 = scmp.ne.s32.totalorder %s259, %s273
      %p275 = scmp.eq.s32.totalorder %s39, 0
      %p276 = por %p274, %p275
      %s278 = sadd.s32 %s277, 1
      %p281 = scmp.eq.s32.totalorder %s33, 1
      %p282 = scmp.ne.s32.totalorder %s277, %s279
      %p283 = scmp.eq.s32.totalorder %s33, 0
      %p284 = por %p282, %p283
      %p285 = scmp.ne.s32.totalorder %s277, %s279
      %p286 = scmp.eq.s32.totalorder %s38, 1
      %p287 = por %p285, %p286
      %p288 = scmp.ne.s32.totalorder %s279, %s280
      %p289 = scmp.eq.s32.totalorder %s38, 0
      %p290 = por %p288, %p289
      %p291 = scmp.ne.s32.totalorder %s279, %s280
      %p292 = scmp.eq.s32.totalorder %s39, 1
      %p293 = por %p291, %p292
      %p295 = scmp.ne.s32.totalorder %s280, %s294
      %p296 = scmp.eq.s32.totalorder %s39, 0
      %p297 = por %p295, %p296
      %s299 = sadd.s32 %s298, 1
      %p302 = scmp.eq.s32.totalorder %s33, 1
      %p303 = scmp.ne.s32.totalorder %s298, %s300
      %p304 = scmp.eq.s32.totalorder %s33, 0
      %p305 = por %p303, %p304
      %p306 = scmp.ne.s32.totalorder %s298, %s300
      %p307 = scmp.eq.s32.totalorder %s38, 1
      %p308 = por %p306, %p307
      %p309 = scmp.ne.s32.totalorder %s300, %s301
      %p310 = scmp.eq.s32.totalorder %s38, 0
      %p311 = por %p309, %p310
      %p312 = scmp.ne.s32.totalorder %s300, %s301
      %p313 = scmp.eq.s32.totalorder %s39, 1
      %p314 = por %p312, %p313
      %p316 = scmp.ne.s32.totalorder %s301, %s315
      %p317 = scmp.eq.s32.totalorder %s39, 0
      %p318 = por %p316, %p317
      %s320 = sadd.s32 %s319, 1
      %p323 = scmp.eq.s32.totalorder %s33, 1
      %p324 = scmp.ne.s32.totalorder %s319, %s321
      %p325 = scmp.eq.s32.totalorder %s33, 0
      %p326 = por %p324, %p325
      %p327 = scmp.ne.s32.totalorder %s319, %s321
      %p328 = scmp.eq.s32.totalorder %s38, 1
      %p329 = por %p327, %p328
      %p330 = scmp.ne.s32.totalorder %s321, %s322
      %p331 = scmp.eq.s32.totalorder %s38, 0
      %p332 = por %p330, %p331
      %p333 = scmp.ne.s32.totalorder %s321, %s322
      %p334 = scmp.eq.s32.totalorder %s39, 1
      %p335 = por %p333, %p334
      %p337 = scmp.ne.s32.totalorder %s322, %s336
      %p338 = scmp.eq.s32.totalorder %s39, 0
      %p339 = por %p337, %p338
      %s341 = sadd.s32 %s340, 1
      %p344 = scmp.eq.s32.totalorder %s33, 1
      %p345 = scmp.ne.s32.totalorder %s340, %s342
      %p346 = scmp.eq.s32.totalorder %s33, 0
      %p347 = por %p345, %p346
      %p348 = scmp.ne.s32.totalorder %s340, %s342
      %p349 = scmp.eq.s32.totalorder %s38, 1
      %p350 = por %p348, %p349
      %p351 = scmp.ne.s32.totalorder %s342, %s343
      %p352 = scmp.eq.s32.totalorder %s38, 0
      %p353 = por %p351, %p352
      %p354 = scmp.ne.s32.totalorder %s342, %s343
      %p355 = scmp.eq.s32.totalorder %s39, 1
      %p356 = por %p354, %p355
      %p358 = scmp.ne.s32.totalorder %s343, %s357
      %p359 = scmp.eq.s32.totalorder %s39, 0
      %p360 = por %p358, %p359
      %s362 = sadd.s32 %s361, 1
      %p365 = scmp.eq.s32.totalorder %s33, 1
      %p366 = scmp.ne.s32.totalorder %s361, %s363
      %p367 = scmp.eq.s32.totalorder %s33, 0
      %p368 = por %p366, %p367
      %p369 = scmp.ne.s32.totalorder %s361, %s363
      %p370 = scmp.eq.s32.totalorder %s38, 1
      %p371 = por %p369, %p370
      %p372 = scmp.ne.s32.totalorder %s363, %s364
      %p373 = scmp.eq.s32.totalorder %s38, 0
      %p374 = por %p372, %p373
      %p375 = scmp.ne.s32.totalorder %s363, %s364
      %p376 = scmp.eq.s32.totalorder %s39, 1
      %p377 = por %p375, %p376
      %p379 = scmp.ne.s32.totalorder %s364, %s378
      %p380 = scmp.eq.s32.totalorder %s39, 0
      %p381 = por %p379, %p380
      %s382 = ssub.s32 %s33, %s40
      %p383 = scmp.eq.s32.totalorder %s382, 0
      %s385 = sadd.s32 %s384, 1
      %s386 = scalar_select %p383, %s384, %s385
      %p389 = pneg %p383
      %p390 = scmp.eq.s32.totalorder %s33, 1
      %p391 = por %p389, %p390
      %p392 = scmp.ne.s32.totalorder %s384, %s387
      %p393 = scmp.eq.s32.totalorder %s33, 0
      %p394 = por %p392, %p393
      %p395 = scmp.ne.s32.totalorder %s384, %s387
      %p396 = scmp.eq.s32.totalorder %s38, 1
      %p397 = por %p395, %p396
      %p398 = scmp.ne.s32.totalorder %s387, %s388
      %p399 = scmp.eq.s32.totalorder %s38, 0
      %p400 = por %p398, %p399
      %p401 = scmp.ne.s32.totalorder %s387, %s388
      %p402 = scmp.eq.s32.totalorder %s39, 1
      %p403 = por %p401, %p402
      %p405 = scmp.ne.s32.totalorder %s388, %s404
      %p406 = scmp.eq.s32.totalorder %s39, 0
      %p407 = por %p405, %p406
      %s408 = ssub.s32 %s33, %s40
      %p409 = scmp.eq.s32.totalorder %s408, 0
      %s411 = sadd.s32 %s410, 1
      %s412 = scalar_select %p409, %s410, %s411
      %p415 = pneg %p409
      %p416 = scmp.eq.s32.totalorder %s33, 1
      %p417 = por %p415, %p416
      %p418 = scmp.ne.s32.totalorder %s410, %s413
      %p419 = scmp.eq.s32.totalorder %s33, 0
      %p420 = por %p418, %p419
      %p421 = scmp.ne.s32.totalorder %s410, %s413
      %p422 = scmp.eq.s32.totalorder %s38, 1
      %p423 = por %p421, %p422
      %p424 = scmp.ne.s32.totalorder %s413, %s414
      %p425 = scmp.eq.s32.totalorder %s38, 0
      %p426 = por %p424, %p425
      %p427 = scmp.ne.s32.totalorder %s413, %s414
      %p428 = scmp.eq.s32.totalorder %s39, 1
      %p429 = por %p427, %p428
      %p431 = scmp.ne.s32.totalorder %s414, %s430
      %p432 = scmp.eq.s32.totalorder %s39, 0
      %p433 = por %p431, %p432
      %p434 = scmp.le.s32.totalorder 1, %s33
      %p435 = scmp.lt.s32.totalorder %s33, 3
      %p436 = pnand %p434, %p435
      %p437 = pneg %p436
      // Predicated region
      $region9: #{tpu_custom_call.1} parent=5 // pred_check
        _
      $region10: #{tpu_custom_call.1} parent=5 // pred_check_branch
        %439 = sbr.rel (%p436) target = $region12
      $region11: #{tpu_custom_call.1} parent=5 // pred_region
        %s440 = ssub.s32 %s33, 1
        // Predicated region
        $region13: #{tpu_custom_call.1} parent=11 // pred_check
          %p441 = pneg %p80
        $region14: #{tpu_custom_call.1} parent=11 // pred_check_branch
          %443 = sbr.rel (%p441) target = $region16
        $region15: #{tpu_custom_call.1} parent=11 // pred_region
          _
        $region16: #{tpu_custom_call.1} parent=11 // pred_fallthru
          _
        // Predicated region
        $region17: #{tpu_custom_call.1} parent=11 // pred_check
          %p444 = pneg %p101
        $region18: #{tpu_custom_call.1} parent=11 // pred_check_branch
          %446 = sbr.rel (%p444) target = $region20
        $region19: #{tpu_custom_call.1} parent=11 // pred_region
          _
        $region20: #{tpu_custom_call.1} parent=11 // pred_fallthru
          _
        // Predicated region
        $region21: #{tpu_custom_call.1} parent=11 // pred_check
          %p447 = pneg %p122
        $region22: #{tpu_custom_call.1} parent=11 // pred_check_branch
          %449 = sbr.rel (%p447) target = $region24
        $region23: #{tpu_custom_call.1} parent=11 // pred_region
          _
        $region24: #{tpu_custom_call.1} parent=11 // pred_fallthru
          _
        // Predicated region
        $region25: #{tpu_custom_call.1} parent=11 // pred_check
          %p450 = pneg %p143
        $region26: #{tpu_custom_call.1} parent=11 // pred_check_branch
          %452 = sbr.rel (%p450) target = $region28
        $region27: #{tpu_custom_call.1} parent=11 // pred_region
          _
        $region28: #{tpu_custom_call.1} parent=11 // pred_fallthru
          _
        // Predicated region
        $region29: #{tpu_custom_call.1} parent=11 // pred_check
          %p453 = pneg %p164
        $region30: #{tpu_custom_call.1} parent=11 // pred_check_branch
          %455 = sbr.rel (%p453) target = $region32
        $region31: #{tpu_custom_call.1} parent=11 // pred_region
          _
        $region32: #{tpu_custom_call.1} parent=11 // pred_fallthru
          _
        // Predicated region
        $region33: #{tpu_custom_call.1} parent=11 // pred_check
          %p456 = pneg %p185
        $region34: #{tpu_custom_call.1} parent=11 // pred_check_branch
          %458 = sbr.rel (%p456) target = $region36
        $region35: #{tpu_custom_call.1} parent=11 // pred_region
          %s460 = ssub.s32 16, 16
          %461 = vsyncadd [#allocation3], %s460
          %s463 = sshll.u32 [#allocation2], 4
          %s464 = int_to_ptr.vmem [resolvable:$true] %s463
          %466 = dma.hbm_to_vmem [thread:$0]  %s6, 16, %s464, [#allocation3]
        $region36: #{tpu_custom_call.1} parent=11 // pred_fallthru
          _
        // Predicated region
        $region37: #{tpu_custom_call.1} parent=11 // pred_check
          %p467 = pneg %p206
        $region38: #{tpu_custom_call.1} parent=11 // pred_check_branch
          %469 = sbr.rel (%p467) target = $region40
        $region39: #{tpu_custom_call.1} parent=11 // pred_region
          %s471 = ssub.s32 192, 192
          %472 = vsyncadd [#allocation7], %s471
          %s473 = sshll.u32 [#allocation6], 4
          %s474 = int_to_ptr.vmem [resolvable:$true] %s473
          %479 = dma.hbm_to_vmem [thread:$0]  %s7, 192, %s474, [#allocation7], 64, 64, 4
        $region40: #{tpu_custom_call.1} parent=11 // pred_fallthru
          _
        // Predicated region
        $region41: #{tpu_custom_call.1} parent=11 // pred_check
          %p480 = pneg %p227
        $region42: #{tpu_custom_call.1} parent=11 // pred_check_branch
          %482 = sbr.rel (%p480) target = $region44
        $region43: #{tpu_custom_call.1} parent=11 // pred_region
          _
        $region44: #{tpu_custom_call.1} parent=11 // pred_fallthru
          _
        // Predicated region
        $region45: #{tpu_custom_call.1} parent=11 // pred_check
          %p483 = pneg %p248
        $region46: #{tpu_custom_call.1} parent=11 // pred_check_branch
          %485 = sbr.rel (%p483) target = $region48
        $region47: #{tpu_custom_call.1} parent=11 // pred_region
          _
        $region48: #{tpu_custom_call.1} parent=11 // pred_fallthru
          _
        // Predicated region
        $region49: #{tpu_custom_call.1} parent=11 // pred_check
          %p486 = pneg %p269
        $region50: #{tpu_custom_call.1} parent=11 // pred_check_branch
          %488 = sbr.rel (%p486) target = $region52
        $region51: #{tpu_custom_call.1} parent=11 // pred_region
          _
        $region52: #{tpu_custom_call.1} parent=11 // pred_fallthru
          _
        // Predicated region
        $region53: #{tpu_custom_call.1} parent=11 // pred_check
          %p489 = pneg %p290
        $region54: #{tpu_custom_call.1} parent=11 // pred_check_branch
          %491 = sbr.rel (%p489) target = $region56
        $region55: #{tpu_custom_call.1} parent=11 // pred_region
          _
        $region56: #{tpu_custom_call.1} parent=11 // pred_fallthru
          _
        // Predicated region
        $region57: #{tpu_custom_call.1} parent=11 // pred_check
          %p492 = pneg %p311
        $region58: #{tpu_custom_call.1} parent=11 // pred_check_branch
          %494 = sbr.rel (%p492) target = $region60
        $region59: #{tpu_custom_call.1} parent=11 // pred_region
          _
        $region60: #{tpu_custom_call.1} parent=11 // pred_fallthru
          _
        // Predicated region
        $region61: #{tpu_custom_call.1} parent=11 // pred_check
          %p495 = pneg %p332
        $region62: #{tpu_custom_call.1} parent=11 // pred_check_branch
          %497 = sbr.rel (%p495) target = $region64
        $region63: #{tpu_custom_call.1} parent=11 // pred_region
          _
        $region64: #{tpu_custom_call.1} parent=11 // pred_fallthru
          _
        // Predicated region
        $region65: #{tpu_custom_call.1} parent=11 // pred_check
          %p498 = pneg %p353
        $region66: #{tpu_custom_call.1} parent=11 // pred_check_branch
          %500 = sbr.rel (%p498) target = $region68
        $region67: #{tpu_custom_call.1} parent=11 // pred_region
          _
        $region68: #{tpu_custom_call.1} parent=11 // pred_fallthru
          _
        // Predicated region
        $region69: #{tpu_custom_call.1} parent=11 // pred_check
          %p501 = pneg %p374
        $region70: #{tpu_custom_call.1} parent=11 // pred_check_branch
          %503 = sbr.rel (%p501) target = $region72
        $region71: #{tpu_custom_call.1} parent=11 // pred_region
          %s505 = ssub.s32 16, 16
          %506 = vsyncadd [#allocation5], %s505
          %s508 = sshll.u32 %s15, 4
          %s509 = int_to_ptr.vmem [resolvable:$true] %s508
          %511 = dma.vmem_to_smem %s509, 16, [#allocation8], [#allocation5]
        $region72: #{tpu_custom_call.1} parent=11 // pred_fallthru
          _
      $region12: #{tpu_custom_call.1} parent=5 // pred_fallthru
        _
      %p512 = scmp.lt.s32.totalorder %s33, 2
      // Predicated region
      $region73: #{tpu_custom_call.1} parent=5 // pred_check
        %p513 = pneg %p512
      $region74: #{tpu_custom_call.1} parent=5 // pred_check_branch
        %515 = sbr.rel (%p513) target = $region76
      $region75: #{tpu_custom_call.1} parent=5 // pred_region
        // Predicated region
        $region77: #{tpu_custom_call.1} parent=75 // pred_check
          %p516 = pneg %p53
        $region78: #{tpu_custom_call.1} parent=75 // pred_check_branch
          %518 = sbr.rel (%p516) target = $region80
        $region79: #{tpu_custom_call.1} parent=75 // pred_region
          %p519 = scmp.lt.s32.totalorder %s33, 1
          %s520 = scalar_select %p519, %s33, 1
          %s521 = smul.addr %s520, 8
          %s522 = scalar_lea.vmem %s0, %s521
        $region80: #{tpu_custom_call.1} parent=75 // pred_fallthru
          _
      $region76: #{tpu_custom_call.1} parent=5 // pred_fallthru
        _
      %p523 = scmp.le.s32.totalorder 1, %s33
      %p524 = scmp.lt.s32.totalorder %s33, 3
      %p525 = pnand %p523, %p524
      %p526 = pneg %p525
      // Predicated region
      $region81: #{tpu_custom_call.1} parent=5 // pred_check
        _
      $region82: #{tpu_custom_call.1} parent=5 // pred_check_branch
        %528 = sbr.rel (%p525) target = $region84
      $region83: #{tpu_custom_call.1} parent=5 // pred_region
        %s529 = ssub.s32 %s33, 1
        // Predicated region
        $region85: #{tpu_custom_call.1} parent=83 // pred_check
          %p530 = pneg %p185
        $region86: #{tpu_custom_call.1} parent=83 // pred_check_branch
          %532 = sbr.rel (%p530) target = $region88
        $region87: #{tpu_custom_call.1} parent=83 // pred_region
          %533 = dma.done [#allocation3], 16
        $region88: #{tpu_custom_call.1} parent=83 // pred_fallthru
          _
        // Predicated region
        $region89: #{tpu_custom_call.1} parent=83 // pred_check
          %p534 = pneg %p206
        $region90: #{tpu_custom_call.1} parent=83 // pred_check_branch
          %536 = sbr.rel (%p534) target = $region92
        $region91: #{tpu_custom_call.1} parent=83 // pred_region
          %537 = dma.done [#allocation7], 192
        $region92: #{tpu_custom_call.1} parent=83 // pred_fallthru
          _
        // Predicated region
        $region93: #{tpu_custom_call.1} parent=83 // pred_check
          %p538 = pneg %p374
        $region94: #{tpu_custom_call.1} parent=83 // pred_check_branch
          %540 = sbr.rel (%p538) target = $region96
        $region95: #{tpu_custom_call.1} parent=83 // pred_region
          %541 = dma.done [#allocation5], 16
        $region96: #{tpu_custom_call.1} parent=83 // pred_fallthru
          _
        %542 = sfence
        %p543 = scmp.lt.s32.totalorder %s38, 1
        %s544 = scalar_select %p543, %s38, 1
        %s545 = smul.addr %s544, 8
        %s546 = scalar_lea.vmem %s0, %s545
        %p547 = pneg %p59
        %p548 = pneg %p56
        %p549 = pneg %p80
        %p550 = pneg %p77
        %p551 = pneg %p101
        %p552 = pneg %p98
        %p553 = pneg %p122
        %p554 = pneg %p119
        %p555 = pneg %p143
        %p556 = pneg %p140
        %p557 = pneg %p164
        %p558 = pneg %p161
        %p559 = pneg %p185
        %p560 = pneg %p182
        %p561 = pneg %p206
        %p562 = pneg %p203
        %p563 = pneg %p227
        %p564 = pneg %p224
        %p565 = pneg %p248
        %p566 = pneg %p245
        %p567 = pneg %p269
        %p568 = pneg %p266
        %p569 = pneg %p290
        %p570 = pneg %p287
        %p571 = pneg %p311
        %p572 = pneg %p308
        %p573 = pneg %p332
        %p574 = pneg %p329
        %p575 = pneg %p353
        %p576 = pneg %p350
        %p577 = pneg %p374
        %p578 = pneg %p371
        %p579 = pneg %p400
        %p580 = pneg %p397
        %s581 = sand.u32 %s387, 1
        %s582 = scalar_lea.sflag [#allocation4], %s581
        %s583 = sand.u32 %s387, 1
        %s584 = smul.addr %s583, 8
        %s585 = scalar_lea.vmem [#allocation9], %s584
        %p586 = pneg %p426
        %p587 = pneg %p423
        %s588 = sand.u32 %s413, 1
        %s589 = scalar_lea.sflag [#allocation11], %s588
        %s590 = sand.u32 %s413, 1
        %s591 = smul.addr %s590, 8
        %s592 = scalar_lea.vmem [#allocation10], %s591
        %p593 = scmp.lt.s32.totalorder %s38, 1
        %s594 = scalar_select %p593, %s38, 1
        %s595 = smul.addr %s594, 8
        %s596 = scalar_lea.vmem %s0, %s595
        %s598 = smul.u32 %s38, 8
        %s599 = sld [smem:[#allocation8]]
        %s600 = sld [smem:[#allocation8 + $0x1]]
        %s601 = sld [smem:[#allocation8 + $0x2]]
        %s602 = sld [smem:[#allocation8 + $0x3]]
        %s603 = sld [smem:[#allocation8 + $0x4]]
        %s604 = sld [smem:[#allocation8 + $0x5]]
        %s605 = sld [smem:[#allocation8 + $0x6]]
        %s606 = sld [smem:[#allocation8 + $0x7]]
        %v607 = vld [vmem:[%s596] sm:$0xff]
        %v608 = vpack.c.bf16 %v607, %v607
        %v609 = vld [vmem:[%s1] sm:$0xf]
        %v610 = vld [vmem:[%s1 + $0x4] sm:$0xf]
        %v611 = vld [vmem:[%s1 + $0x8] sm:$0xf]
        %v612 = vld [vmem:[%s1 + $0xc] sm:$0xf]
        %v613 = vld [vmem:[%s1 + $0x10] sm:$0xf]
        %v614 = vld [vmem:[%s1 + $0x14] sm:$0xf]
        %v615 = vld [vmem:[%s1 + $0x18] sm:$0xf]
        %v616 = vld [vmem:[%s1 + $0x1c] sm:$0xf]
        %v617 = vld [vmem:[%s2] sm:$0x1]
        %v619 = vlaneseq
        %v620 = vshrl.u32 %v619, 7
        %v621 = vsub.s32 0, %v620
        %v622 = vrot.slane %v617, %v621
        %v632 = vunpack.c.l.b16 %v609
        %v633 = vunpack.c.l.b16 %v610
        %v634 = vunpack.c.l.b16 %v611
        %v635 = vunpack.c.l.b16 %v612
        %v636 = vunpack.c.l.b16 %v613
        %v637 = vunpack.c.l.b16 %v614
        %v638 = vunpack.c.l.b16 %v615
        %v639 = vunpack.c.l.b16 %v616
        %v640 = vpack.c.b16 %v633, %v632
        %v641 = vpack.c.b16 %v635, %v634
        %v642 = vpack.c.b16 %v637, %v636
        %v643 = vpack.c.b16 %v639, %v638
        %vm648 = vcmask 523264
        %v650 = vsel %vm648, %v608, 0
        %652 = vmatprep.subr.bf16.mxu0 0
        %653 = vmatpush1.bf16.msra.mxu0 %v640
        %654 = vmatprep.subr.bf16.mxu0 0
        %655 = vmatpush1.bf16.msra.mxu0 %v641
        %656 = vmatprep.subr.bf16.mxu0 0
        %657 = vmatpush1.bf16.msra.mxu0 %v642
        %658 = vmatprep.subr.bf16.mxu0 0
        %659 = vmatpush1.bf16.msra.mxu0 %v643
        %660 = vmatprep.subr.bf16.mxu0 0
        %661 = vmatpush1.bf16.msra.mxu0 0
        %662 = vmatprep.subr.bf16.mxu0 0
        %663 = vmatpush1.bf16.msra.mxu0 0
        %664 = vmatprep.subr.bf16.mxu0 0
        %665 = vmatpush1.bf16.msra.mxu0 0
        %666 = vmatprep.subr.bf16.mxu0 0
        %667 = vmatpush1.bf16.msra.mxu0 0
        %668 = vmatprep.subr.bf16.mxu0 0
        %669 = vmatpush1.bf16.msra.mxu0 0
        %670 = vmatprep.subr.bf16.mxu0 0
        %671 = vmatpush1.bf16.msra.mxu0 0
        %672 = vmatprep.subr.bf16.mxu0 0
        %673 = vmatpush1.bf16.msra.mxu0 0
        %674 = vmatprep.subr.bf16.mxu0 0
        %675 = vmatpush1.bf16.msra.mxu0 0
        %676 = vmatprep.subr.bf16.mxu0 0
        %677 = vmatpush1.bf16.msra.mxu0 0
        %678 = vmatprep.subr.bf16.mxu0 0
        %679 = vmatpush1.bf16.msra.mxu0 0
        %680 = vmatprep.subr.bf16.mxu0 0
        %681 = vmatpush1.bf16.msra.mxu0 0
        %682 = vmatprep.subr.bf16.mxu0 0
        %683 = vmatpush1.bf16.msra.mxu0 0
        %684 = vmatprep.mubr.bf16.mxu0 0
        %685 = vmatmul.mubr.bf16.gmra.mrb[0].mxu0 %v650
        %v686 = vpop.f32.mrb[0].mxu0
        %v687 = vadd.f32 %v622, %v686
        %v688 = vpop.f32.mrb[0].mxu0
        %v689 = vpop.f32.mrb[0].mxu0
        %v690 = vpop.f32.mrb[0].mxu0
        %691 = vdwg.mxu0
        %v692 = vstv %s603
        %v693 = vmul.f32 %v687, %v692
        %v694 = vtanh.pop %v693
        %v695 = vstv %s599
        %v696 = vmul.f32 %v694, %v695
        %v697 = vpack.c.bf16 %v696, %v696
        %v698 = vld [vmem:[%s3] sm:$0xf]
        %v699 = vld [vmem:[%s3 + $0x4] sm:$0xf]
        %v700 = vld [vmem:[%s3 + $0x8] sm:$0xf]
        %v701 = vld [vmem:[%s3 + $0xc] sm:$0xf]
        %v702 = vld [vmem:[%s4] sm:$0x1]
        %v704 = vlaneseq
        %v705 = vshrl.u32 %v704, 7
        %v706 = vsub.s32 0, %v705
        %v707 = vrot.slane %v702, %v706
        %v713 = vunpack.c.l.b16 %v698
        %v714 = vunpack.c.l.b16 %v699
        %v715 = vunpack.c.l.b16 %v700
        %v716 = vunpack.c.l.b16 %v701
        %v717 = vpack.c.b16 %v714, %v713
        %v718 = vpack.c.b16 %v716, %v715
        %vm721 = vcmask 261120
        %v723 = vsel %vm721, %v697, 0
        %725 = vmatprep.subr.bf16.mxu0 0
        %726 = vmatpush1.bf16.msra.mxu0 %v717
        %727 = vmatprep.subr.bf16.mxu0 0
        %728 = vmatpush1.bf16.msra.mxu0 %v718
        %729 = vmatprep.subr.bf16.mxu0 0
        %730 = vmatpush1.bf16.msra.mxu0 0
        %731 = vmatprep.subr.bf16.mxu0 0
        %732 = vmatpush1.bf16.msra.mxu0 0
        %733 = vmatprep.subr.bf16.mxu0 0
        %734 = vmatpush1.bf16.msra.mxu0 0
        %735 = vmatprep.subr.bf16.mxu0 0
        %736 = vmatpush1.bf16.msra.mxu0 0
        %737 = vmatprep.subr.bf16.mxu0 0
        %738 = vmatpush1.bf16.msra.mxu0 0
        %739 = vmatprep.subr.bf16.mxu0 0
        %740 = vmatpush1.bf16.msra.mxu0 0
        %741 = vmatprep.subr.bf16.mxu0 0
        %742 = vmatpush1.bf16.msra.mxu0 0
        %743 = vmatprep.subr.bf16.mxu0 0
        %744 = vmatpush1.bf16.msra.mxu0 0
        %745 = vmatprep.subr.bf16.mxu0 0
        %746 = vmatpush1.bf16.msra.mxu0 0
        %747 = vmatprep.subr.bf16.mxu0 0
        %748 = vmatpush1.bf16.msra.mxu0 0
        %749 = vmatprep.subr.bf16.mxu0 0
        %750 = vmatpush1.bf16.msra.mxu0 0
        %751 = vmatprep.subr.bf16.mxu0 0
        %752 = vmatpush1.bf16.msra.mxu0 0
        %753 = vmatprep.subr.bf16.mxu0 0
        %754 = vmatpush1.bf16.msra.mxu0 0
        %755 = vmatprep.subr.bf16.mxu0 0
        %756 = vmatpush1.bf16.msra.mxu0 0
        %757 = vmatprep.mubr.bf16.mxu0 0
        %758 = vmatmul.mubr.bf16.gmra.mrb[0].mxu0 %v723
        %v759 = vpop.f32.mrb[0].mxu0
        %v760 = vadd.f32 %v707, %v759
        %v761 = vpop.f32.mrb[0].mxu0
        %v762 = vpop.f32.mrb[0].mxu0
        %v763 = vpop.f32.mrb[0].mxu0
        %764 = vdwg.mxu0
        %v765 = vstv %s604
        %v766 = vmul.f32 %v760, %v765
        %v767 = vtanh.pop %v766
        %v768 = vstv %s600
        %v769 = vmul.f32 %v767, %v768
        %v770 = vpack.c.bf16 %v769, %v769
        %v771 = vld [vmem:[%s5] sm:$0xf]
        %v772 = vld [vmem:[%s5 + $0x4] sm:$0xf]
        %v773 = vld [vmem:[%s5 + $0x8] sm:$0xf]
        %v774 = vld [vmem:[%s5 + $0xc] sm:$0xf]
        %v775 = vld [vmem:[#allocation2] sm:$0x1]
        %v777 = vlaneseq
        %v778 = vshrl.u32 %v777, 7
        %v779 = vsub.s32 0, %v778
        %v780 = vrot.slane %v775, %v779
        %v786 = vunpack.c.l.b16 %v771
        %v787 = vunpack.c.l.b16 %v772
        %v788 = vunpack.c.l.b16 %v773
        %v789 = vunpack.c.l.b16 %v774
        %v790 = vpack.c.b16 %v787, %v786
        %v791 = vpack.c.b16 %v789, %v788
        %v795 = vsel %vm721, %v770, 0
        %797 = vmatprep.subr.bf16.mxu0 0
        %798 = vmatpush1.bf16.msra.mxu0 %v790
        %799 = vmatprep.subr.bf16.mxu0 0
        %800 = vmatpush1.bf16.msra.mxu0 %v791
        %801 = vmatprep.subr.bf16.mxu0 0
        %802 = vmatpush1.bf16.msra.mxu0 0
        %803 = vmatprep.subr.bf16.mxu0 0
        %804 = vmatpush1.bf16.msra.mxu0 0
        %805 = vmatprep.subr.bf16.mxu0 0
        %806 = vmatpush1.bf16.msra.mxu0 0
        %807 = vmatprep.subr.bf16.mxu0 0
        %808 = vmatpush1.bf16.msra.mxu0 0
        %809 = vmatprep.subr.bf16.mxu0 0
        %810 = vmatpush1.bf16.msra.mxu0 0
        %811 = vmatprep.subr.bf16.mxu0 0
        %812 = vmatpush1.bf16.msra.mxu0 0
        %813 = vmatprep.subr.bf16.mxu0 0
        %814 = vmatpush1.bf16.msra.mxu0 0
        %815 = vmatprep.subr.bf16.mxu0 0
        %816 = vmatpush1.bf16.msra.mxu0 0
        %817 = vmatprep.subr.bf16.mxu0 0
        %818 = vmatpush1.bf16.msra.mxu0 0
        %819 = vmatprep.subr.bf16.mxu0 0
        %820 = vmatpush1.bf16.msra.mxu0 0
        %821 = vmatprep.subr.bf16.mxu0 0
        %822 = vmatpush1.bf16.msra.mxu0 0
        %823 = vmatprep.subr.bf16.mxu0 0
        %824 = vmatpush1.bf16.msra.mxu0 0
        %825 = vmatprep.subr.bf16.mxu0 0
        %826 = vmatpush1.bf16.msra.mxu0 0
        %827 = vmatprep.subr.bf16.mxu0 0
        %828 = vmatpush1.bf16.msra.mxu0 0
        %829 = vmatprep.mubr.bf16.mxu0 0
        %830 = vmatmul.mubr.bf16.gmra.mrb[0].mxu0 %v795
        %v831 = vpop.f32.mrb[0].mxu0
        %v832 = vadd.f32 %v780, %v831
        %v833 = vpop.f32.mrb[0].mxu0
        %v834 = vpop.f32.mrb[0].mxu0
        %v835 = vpop.f32.mrb[0].mxu0
        %836 = vdwg.mxu0
        %v837 = vld [vmem:[#allocation6] sm:$0xf]
        %v838 = vld [vmem:[#allocation6 + $0x4] sm:$0xf]
        %v839 = vld [vmem:[#allocation6 + $0x8] sm:$0x1]
        %v840 = vmul.f32 %v832, -2.0
        %vm841 = vcmask 130048
        %v842 = vsel %vm841, %v840, 1.0
        %v843 = vpack.c.bf16 %v842, %v842
        %v847 = vunpack.c.l.b16 %v837
        %v848 = vunpack.c.l.b16 %v838
        %v849 = vunpack.c.l.b16 %v839
        %v850 = vpack.c.b16 %v848, %v847
        %v851 = vpack.c.b16 %v849, %v849
        %vm853 = vcmask 138240
        %v855 = vsel %vm853, %v843, 0
        %vm857 = vcmask 1040384
        %v858 = vsel 0, 4294967295, 65535
        %v859 = vsel %vm857, %v858, 0
        %v861 = vand.u32 %v851, %v859
        %863 = vmatprep.subr.bf16.mxu0 0
        %864 = vmatpush1.bf16.msra.mxu0 %v850
        %865 = vmatprep.subr.bf16.mxu0 0
        %866 = vmatpush1.bf16.msra.mxu0 %v861
        %867 = vmatprep.subr.bf16.mxu0 0
        %868 = vmatpush1.bf16.msra.mxu0 0
        %869 = vmatprep.subr.bf16.mxu0 0
        %870 = vmatpush1.bf16.msra.mxu0 0
        %871 = vmatprep.subr.bf16.mxu0 0
        %872 = vmatpush1.bf16.msra.mxu0 0
        %873 = vmatprep.subr.bf16.mxu0 0
        %874 = vmatpush1.bf16.msra.mxu0 0
        %875 = vmatprep.subr.bf16.mxu0 0
        %876 = vmatpush1.bf16.msra.mxu0 0
        %877 = vmatprep.subr.bf16.mxu0 0
        %878 = vmatpush1.bf16.msra.mxu0 0
        %879 = vmatprep.subr.bf16.mxu0 0
        %880 = vmatpush1.bf16.msra.mxu0 0
        %881 = vmatprep.subr.bf16.mxu0 0
        %882 = vmatpush1.bf16.msra.mxu0 0
        %883 = vmatprep.subr.bf16.mxu0 0
        %884 = vmatpush1.bf16.msra.mxu0 0
        %885 = vmatprep.subr.bf16.mxu0 0
        %886 = vmatpush1.bf16.msra.mxu0 0
        %887 = vmatprep.subr.bf16.mxu0 0
        %888 = vmatpush1.bf16.msra.mxu0 0
        %889 = vmatprep.subr.bf16.mxu0 0
        %890 = vmatpush1.bf16.msra.mxu0 0
        %891 = vmatprep.subr.bf16.mxu0 0
        %892 = vmatpush1.bf16.msra.mxu0 0
        %893 = vmatprep.subr.bf16.mxu0 0
        %894 = vmatpush1.bf16.msra.mxu0 0
        %895 = vmatprep.mubr.bf16.mxu0 0
        %896 = vmatmul.mubr.bf16.gmra.mrb[0].mxu0 %v855
        %v897 = vpop.f32.mrb[0].mxu0
        %v898 = vadd.f32 0.0, %v897
        %v899 = vpop.f32.mrb[0].mxu0
        %v900 = vpop.f32.mrb[0].mxu0
        %v901 = vpop.f32.mrb[0].mxu0
        %902 = vdwg.mxu0
        %903 = vmin.xlane.f32.xlu0 %v898
        %v904 = vpop.xlane.xlu0 %903
        %v905 = vlaneseq
        %v906 = vand.u32 %v905, 127
        %vm907 = vcmp.le.f32.partialorder %v898, %v904
        %v908 = vsel %vm907, %v906, 128
        %v909 = vand.u32 %v908, 65535
        %v910 = vshra.s32 %v908, 16
        %v911 = vcvt.s32.f32 %v909
        %v912 = vcvt.s32.f32 %v910
        %913 = vmin.xlane.f32.xlu0 %v912
        %v914 = vpop.xlane.xlu0 %913
        %vm915 = vcmp.eq.f32.partialorder %v912, %v914
        %v916 = vsel %vm915, %v911, inf
        %917 = vmin.xlane.f32.xlu0 %v916
        %v918 = vpop.xlane.xlu0 %917
        %v919 = vcvt.f32.s32 %v918
        %v920 = vcvt.f32.s32 %v914
        %v921 = vshll.u32 %v920, 16
        %v922 = vadd.s32 %v921, %v919
        %vm923 = vcmp.eq.s32.totalorder %v906, %v922
        %v924 = vsel %vm923, 1, 0
        %v925 = vcvt.s32.f32 %v924
        %v926 = vld [vmem:[%s8] sm:$0xff]
        %v927 = vld [vmem:[%s8 + $0x8] sm:$0xff]
        %928 = vmatprep.subr.mxu0 0.0
        %929 = vmatpush1.xpose.msra.mxu0 %v926
        %930 = vmatprep.subr.mxu0 0.0
        %931 = vmatpush1.xpose.msra.mxu0 %v927
        %932 = vmatprep.subr.mxu0 0.0
        %933 = vmatpush1.xpose.msra.mxu0 0.0
        %934 = vmatprep.subr.mxu0 0.0
        %935 = vmatpush1.xpose.msra.mxu0 0.0
        %936 = vmatprep.subr.mxu0 0.0
        %937 = vmatpush1.xpose.msra.mxu0 0.0
        %938 = vmatprep.subr.mxu0 0.0
        %939 = vmatpush1.xpose.msra.mxu0 0.0
        %940 = vmatprep.subr.mxu0 0.0
        %941 = vmatpush1.xpose.msra.mxu0 0.0
        %942 = vmatprep.subr.mxu0 0.0
        %943 = vmatpush1.xpose.msra.mxu0 0.0
        %944 = vmatprep.subr.mxu0 0.0
        %945 = vmatpush1.xpose.msra.mxu0 0.0
        %946 = vmatprep.subr.mxu0 0.0
        %947 = vmatpush1.xpose.msra.mxu0 0.0
        %948 = vmatprep.subr.mxu0 0.0
        %949 = vmatpush1.xpose.msra.mxu0 0.0
        %950 = vmatprep.subr.mxu0 0.0
        %951 = vmatpush1.xpose.msra.mxu0 0.0
        %952 = vmatprep.subr.mxu0 0.0
        %953 = vmatpush1.xpose.msra.mxu0 0.0
        %954 = vmatprep.subr.mxu0 0.0
        %955 = vmatpush1.xpose.msra.mxu0 0.0
        %956 = vmatprep.subr.mxu0 0.0
        %957 = vmatpush1.xpose.msra.mxu0 0.0
        %958 = vmatprep.subr.mxu0 0.0
        %959 = vmatpush1.xpose.msra.mxu0 0.0
        %960 = vmatprep.subr.mxu0 0.0
        %961 = vmatpush1.xpose.msra.mxu0 0.0
        %962 = vmatprep.subr.mxu0 0.0
        %963 = vmatpush1.xpose.msra.mxu0 0.0
        %964 = vmatprep.subr.mxu0 0.0
        %965 = vmatpush1.xpose.msra.mxu0 0.0
        %966 = vmatprep.subr.mxu0 0.0
        %967 = vmatpush1.xpose.msra.mxu0 0.0
        %968 = vmatprep.subr.mxu0 0.0
        %969 = vmatpush1.xpose.msra.mxu0 0.0
        %970 = vmatprep.subr.mxu0 0.0
        %971 = vmatpush1.xpose.msra.mxu0 0.0
        %972 = vmatprep.subr.mxu0 0.0
        %973 = vmatpush1.xpose.msra.mxu0 0.0
        %974 = vmatprep.subr.mxu0 0.0
        %975 = vmatpush1.xpose.msra.mxu0 0.0
        %976 = vmatprep.subr.mxu0 0.0
        %977 = vmatpush1.xpose.msra.mxu0 0.0
        %978 = vmatprep.subr.mxu0 0.0
        %979 = vmatpush1.xpose.msra.mxu0 0.0
        %980 = vmatprep.subr.mxu0 0.0
        %981 = vmatpush1.xpose.msra.mxu0 0.0
        %982 = vmatprep.subr.mxu0 0.0
        %983 = vmatpush1.xpose.msra.mxu0 0.0
        %984 = vmatprep.subr.mxu0 0.0
        %985 = vmatpush1.xpose.msra.mxu0 0.0
        %986 = vmatprep.subr.mxu0 0.0
        %987 = vmatpush1.xpose.msra.mxu0 0.0
        %988 = vmatprep.subr.mxu0 0.0
        %989 = vmatpush1.xpose.msra.mxu0 0.0
        %990 = vmatprep.subr.mxu0 0.0
        %991 = vmatpush1.xpose.msra.mxu0 0.0
        %992 = vmatprep.mubr.f32.mxu0 0.0
        %993 = vmatmul.mubr.f32.gmra.mrb[0].mxu0 %v925
        %v994 = vpop.f32.mrb[0].mxu0
        %v995 = vadd.f32 0.0, %v994
        %v996 = vpop.f32.mrb[0].mxu0
        %997 = vdwg.mxu0
        %v998 = vpack.c.bf16 %v995, %v995
        %v999 = vld [vmem:[%s9] sm:$0xf]
        %v1000 = vld [vmem:[%s9 + $0x4] sm:$0xf]
        %v1001 = vld [vmem:[%s10] sm:$0x1]
        %v1003 = vlaneseq
        %v1004 = vshrl.u32 %v1003, 7
        %v1005 = vsub.s32 0, %v1004
        %v1006 = vrot.slane %v1001, %v1005
        %v1010 = vunpack.c.l.b16 %v999
        %v1011 = vunpack.c.l.b16 %v1000
        %v1012 = vpack.c.b16 %v1011, %v1010
        %v1015 = vsel %vm841, %v998, 0
        %1017 = vmatprep.subr.bf16.mxu0 0
        %1018 = vmatpush1.bf16.msra.mxu0 %v1012
        %1019 = vmatprep.subr.bf16.mxu0 0
        %1020 = vmatpush1.bf16.msra.mxu0 0
        %1021 = vmatprep.subr.bf16.mxu0 0
        %1022 = vmatpush1.bf16.msra.mxu0 0
        %1023 = vmatprep.subr.bf16.mxu0 0
        %1024 = vmatpush1.bf16.msra.mxu0 0
        %1025 = vmatprep.subr.bf16.mxu0 0
        %1026 = vmatpush1.bf16.msra.mxu0 0
        %1027 = vmatprep.subr.bf16.mxu0 0
        %1028 = vmatpush1.bf16.msra.mxu0 0
        %1029 = vmatprep.subr.bf16.mxu0 0
        %1030 = vmatpush1.bf16.msra.mxu0 0
        %1031 = vmatprep.subr.bf16.mxu0 0
        %1032 = vmatpush1.bf16.msra.mxu0 0
        %1033 = vmatprep.subr.bf16.mxu0 0
        %1034 = vmatpush1.bf16.msra.mxu0 0
        %1035 = vmatprep.subr.bf16.mxu0 0
        %1036 = vmatpush1.bf16.msra.mxu0 0
        %1037 = vmatprep.subr.bf16.mxu0 0
        %1038 = vmatpush1.bf16.msra.mxu0 0
        %1039 = vmatprep.subr.bf16.mxu0 0
        %1040 = vmatpush1.bf16.msra.mxu0 0
        %1041 = vmatprep.subr.bf16.mxu0 0
        %1042 = vmatpush1.bf16.msra.mxu0 0
        %1043 = vmatprep.subr.bf16.mxu0 0
        %1044 = vmatpush1.bf16.msra.mxu0 0
        %1045 = vmatprep.subr.bf16.mxu0 0
        %1046 = vmatpush1.bf16.msra.mxu0 0
        %1047 = vmatprep.subr.bf16.mxu0 0
        %1048 = vmatpush1.bf16.msra.mxu0 0
        %1049 = vmatprep.mubr.bf16.mxu0 0
        %1050 = vmatmul.mubr.bf16.gmra.mrb[0].mxu0 %v1015
        %v1051 = vpop.f32.mrb[0].mxu0
        %v1052 = vadd.f32 %v1006, %v1051
        %v1053 = vpop.f32.mrb[0].mxu0
        %v1054 = vpop.f32.mrb[0].mxu0
        %v1055 = vpop.f32.mrb[0].mxu0
        %1056 = vdwg.mxu0
        %v1057 = vstv %s605
        %v1058 = vmul.f32 %v1052, %v1057
        %v1059 = vtanh.pop %v1058
        %v1060 = vstv %s601
        %v1061 = vmul.f32 %v1059, %v1060
        %v1062 = vpack.c.bf16 %v1061, %v1061
        %v1063 = vld [vmem:[%s11] sm:$0xf]
        %v1064 = vld [vmem:[%s11 + $0x4] sm:$0xf]
        %v1065 = vld [vmem:[%s11 + $0x8] sm:$0xf]
        %v1066 = vld [vmem:[%s11 + $0xc] sm:$0xf]
        %v1067 = vld [vmem:[%s12] sm:$0x1]
        %v1069 = vlaneseq
        %v1070 = vshrl.u32 %v1069, 7
        %v1071 = vsub.s32 0, %v1070
        %v1072 = vrot.slane %v1067, %v1071
        %v1078 = vunpack.c.l.b16 %v1063
        %v1079 = vunpack.c.l.b16 %v1064
        %v1080 = vunpack.c.l.b16 %v1065
        %v1081 = vunpack.c.l.b16 %v1066
        %v1082 = vpack.c.b16 %v1079, %v1078
        %v1083 = vpack.c.b16 %v1081, %v1080
        %v1087 = vsel %vm721, %v1062, 0
        %1089 = vmatprep.subr.bf16.mxu0 0
        %1090 = vmatpush1.bf16.msra.mxu0 %v1082
        %1091 = vmatprep.subr.bf16.mxu0 0
        %1092 = vmatpush1.bf16.msra.mxu0 %v1083
        %1093 = vmatprep.subr.bf16.mxu0 0
        %1094 = vmatpush1.bf16.msra.mxu0 0
        %1095 = vmatprep.subr.bf16.mxu0 0
        %1096 = vmatpush1.bf16.msra.mxu0 0
        %1097 = vmatprep.subr.bf16.mxu0 0
        %1098 = vmatpush1.bf16.msra.mxu0 0
        %1099 = vmatprep.subr.bf16.mxu0 0
        %1100 = vmatpush1.bf16.msra.mxu0 0
        %1101 = vmatprep.subr.bf16.mxu0 0
        %1102 = vmatpush1.bf16.msra.mxu0 0
        %1103 = vmatprep.subr.bf16.mxu0 0
        %1104 = vmatpush1.bf16.msra.mxu0 0
        %1105 = vmatprep.subr.bf16.mxu0 0
        %1106 = vmatpush1.bf16.msra.mxu0 0
        %1107 = vmatprep.subr.bf16.mxu0 0
        %1108 = vmatpush1.bf16.msra.mxu0 0
        %1109 = vmatprep.subr.bf16.mxu0 0
        %1110 = vmatpush1.bf16.msra.mxu0 0
        %1111 = vmatprep.subr.bf16.mxu0 0
        %1112 = vmatpush1.bf16.msra.mxu0 0
        %1113 = vmatprep.subr.bf16.mxu0 0
        %1114 = vmatpush1.bf16.msra.mxu0 0
        %1115 = vmatprep.subr.bf16.mxu0 0
        %1116 = vmatpush1.bf16.msra.mxu0 0
        %1117 = vmatprep.subr.bf16.mxu0 0
        %1118 = vmatpush1.bf16.msra.mxu0 0
        %1119 = vmatprep.subr.bf16.mxu0 0
        %1120 = vmatpush1.bf16.msra.mxu0 0
        %1121 = vmatprep.mubr.bf16.mxu0 0
        %1122 = vmatmul.mubr.bf16.gmra.mrb[0].mxu0 %v1087
        %v1123 = vpop.f32.mrb[0].mxu0
        %v1124 = vadd.f32 %v1072, %v1123
        %v1125 = vpop.f32.mrb[0].mxu0
        %v1126 = vpop.f32.mrb[0].mxu0
        %v1127 = vpop.f32.mrb[0].mxu0
        %1128 = vdwg.mxu0
        %v1129 = vstv %s606
        %v1130 = vmul.f32 %v1124, %v1129
        %v1131 = vtanh.pop %v1130
        %v1132 = vstv %s602
        %v1133 = vmul.f32 %v1131, %v1132
        %v1134 = vpack.c.bf16 %v1133, %v1133
        %v1135 = vld [vmem:[%s13] sm:$0xf]
        %v1136 = vld [vmem:[%s13 + $0x4] sm:$0xf]
        %v1137 = vld [vmem:[%s13 + $0x8] sm:$0xf]
        %v1138 = vld [vmem:[%s13 + $0xc] sm:$0xf]
        %v1139 = vld [vmem:[%s14] sm:$0x1]
        %v1141 = vlaneseq
        %v1142 = vshrl.u32 %v1141, 7
        %v1143 = vsub.s32 0, %v1142
        %v1144 = vrot.slane %v1139, %v1143
        %v1150 = vunpack.c.l.b16 %v1135
        %v1151 = vunpack.c.l.b16 %v1136
        %v1152 = vunpack.c.l.b16 %v1137
        %v1153 = vunpack.c.l.b16 %v1138
        %v1154 = vpack.c.b16 %v1151, %v1150
        %v1155 = vpack.c.b16 %v1153, %v1152
        %v1159 = vsel %vm721, %v1134, 0
        %1161 = vmatprep.subr.bf16.mxu0 0
        %1162 = vmatpush1.bf16.msra.mxu0 %v1154
        %1163 = vmatprep.subr.bf16.mxu0 0
        %1164 = vmatpush1.bf16.msra.mxu0 %v1155
        %1165 = vmatprep.subr.bf16.mxu0 0
        %1166 = vmatpush1.bf16.msra.mxu0 0
        %1167 = vmatprep.subr.bf16.mxu0 0
        %1168 = vmatpush1.bf16.msra.mxu0 0
        %1169 = vmatprep.subr.bf16.mxu0 0
        %1170 = vmatpush1.bf16.msra.mxu0 0
        %1171 = vmatprep.subr.bf16.mxu0 0
        %1172 = vmatpush1.bf16.msra.mxu0 0
        %1173 = vmatprep.subr.bf16.mxu0 0
        %1174 = vmatpush1.bf16.msra.mxu0 0
        %1175 = vmatprep.subr.bf16.mxu0 0
        %1176 = vmatpush1.bf16.msra.mxu0 0
        %1177 = vmatprep.subr.bf16.mxu0 0
        %1178 = vmatpush1.bf16.msra.mxu0 0
        %1179 = vmatprep.subr.bf16.mxu0 0
        %1180 = vmatpush1.bf16.msra.mxu0 0
        %1181 = vmatprep.subr.bf16.mxu0 0
        %1182 = vmatpush1.bf16.msra.mxu0 0
        %1183 = vmatprep.subr.bf16.mxu0 0
        %1184 = vmatpush1.bf16.msra.mxu0 0
        %1185 = vmatprep.subr.bf16.mxu0 0
        %1186 = vmatpush1.bf16.msra.mxu0 0
        %1187 = vmatprep.subr.bf16.mxu0 0
        %1188 = vmatpush1.bf16.msra.mxu0 0
        %1189 = vmatprep.subr.bf16.mxu0 0
        %1190 = vmatpush1.bf16.msra.mxu0 0
        %1191 = vmatprep.subr.bf16.mxu0 0
        %1192 = vmatpush1.bf16.msra.mxu0 0
        %1193 = vmatprep.mubr.bf16.mxu0 0
        %1194 = vmatmul.mubr.bf16.gmra.mrb[0].mxu0 %v1159
        %v1195 = vpop.f32.mrb[0].mxu0
        %v1196 = vadd.f32 %v1144, %v1195
        %v1197 = vpop.f32.mrb[0].mxu0
        %v1198 = vpop.f32.mrb[0].mxu0
        %v1199 = vpop.f32.mrb[0].mxu0
        %1200 = vdwg.mxu0
        %1201 = vst.msk [vmem:[%s585] sm:$0xff] %vm648, %v1196
        %v1202 = vlaneseq
        %v1203 = vshrl.u32 %v1202, 7
        %v1204 = vstv %s598
        %v1205 = vadd.s32 %v1203, %v1204
        %vm1206 = vcmp.lt.s32.totalorder %v1205, 16
        %v1207 = vsub.f32 %v995, %v832
        %v1208 = vsel %vm1206, 1, 0
        %vm1209 = vcmp.eq.s32.totalorder %v1208, 1
        %v1210 = vsel %vm1209, %v1207, 0.0
        %v1211 = vmul.f32 %v1210, %v1210
        %v1212 = vsel %vm841, %v1211, 0.0
        %1213 = vadd.xlane.f32.xlu0 %v1212
        %v1214 = vpop.xlane.xlu0 %1213
        %v1215 = vrot.slane %v1214, 4
        %v1216 = vadd.f32 %v1214, %v1215
        %v1217 = vrot.slane %v1216, 2
        %v1218 = vadd.f32 %v1216, %v1217
        %v1219 = vrot.slane %v1218, 1
        %v1220 = vadd.f32 %v1218, %v1219
        %s1221 = vtos %v1220
        %v1222 = vld [vmem:[%s596] sm:$0xff]
        %v1223 = vsub.f32 %v1196, %v1222
        %v1224 = vsel %vm1209, %v1223, 0.0
        %v1225 = vmul.f32 %v1224, %v1224
        %v1226 = vsel %vm648, %v1225, 0.0
        %1227 = vadd.xlane.f32.xlu0 %v1226
        %v1228 = vpop.xlane.xlu0 %1227
        %v1229 = vrot.slane %v1228, 4
        %v1230 = vadd.f32 %v1228, %v1229
        %v1231 = vrot.slane %v1230, 2
        %v1232 = vadd.f32 %v1230, %v1231
        %v1233 = vrot.slane %v1232, 1
        %v1234 = vadd.f32 %v1232, %v1233
        %s1235 = vtos %v1234
        %vm1236 = vcmp.eq.s32.totalorder %v1203, 0
        %vm1237 = vcmp.eq.s32.totalorder %v1203, 1
        %v1238 = vstv %s1235
        %v1239 = vsel %vm1237, %v1238, 0.0
        %v1240 = vstv %s1221
        %v1241 = vsel %vm1236, %v1240, %v1239
        %1242 = vst [vmem:[%s592] sm:$0xff] %v1241
        %s1243 = sand.u32 %s387, 1
        %s1244 = scalar_lea.sflag [#allocation4], %s1243
        %s1245 = sand.u32 %s387, 1
        %s1246 = smul.addr %s1245, 8
        %s1247 = scalar_lea.vmem [#allocation9], %s1246
        %s1248 = sand.u32 %s413, 1
        %s1249 = scalar_lea.sflag [#allocation11], %s1248
        %s1250 = sand.u32 %s413, 1
        %s1251 = smul.addr %s1250, 8
        %s1252 = scalar_lea.vmem [#allocation10], %s1251
        // Predicated region
        $region97: #{tpu_custom_call.1} parent=83 // pred_check
          %p1253 = pneg %p397
        $region98: #{tpu_custom_call.1} parent=83 // pred_check_branch
          %1255 = sbr.rel (%p1253) target = $region100
        $region99: #{tpu_custom_call.1} parent=83 // pred_region
          %s1257 = ssub.s32 128, 128
          %1258 = vsyncadd %s1244, %s1257
          %s1259 = smul.addr %s38, 128
          %s1260 = scalar_lea.hbm %s16, %s1259
          %s1262 = sshll.u32 %s1247, 4
          %s1263 = int_to_ptr.vmem [resolvable:$true] %s1262
          %1265 = dma.vmem_to_hbm [thread:$0]  %s1263, 128, %s1260, %s1244
        $region100: #{tpu_custom_call.1} parent=83 // pred_fallthru
          _
        // Predicated region
        $region101: #{tpu_custom_call.1} parent=83 // pred_check
          %p1266 = pneg %p423
        $region102: #{tpu_custom_call.1} parent=83 // pred_check_branch
          %1268 = sbr.rel (%p1266) target = $region104
        $region103: #{tpu_custom_call.1} parent=83 // pred_region
          %s1270 = ssub.s32 128, 128
          %1271 = vsyncadd %s1249, %s1270
          %s1272 = smul.addr %s38, 128
          %s1273 = scalar_lea.hbm %s17, %s1272
          %s1275 = sshll.u32 %s1252, 4
          %s1276 = int_to_ptr.vmem [resolvable:$true] %s1275
          %1278 = dma.vmem_to_hbm [thread:$0]  %s1276, 128, %s1273, %s1249
        $region104: #{tpu_custom_call.1} parent=83 // pred_fallthru
          _
      $region84: #{tpu_custom_call.1} parent=5 // pred_fallthru
        _
      %p1279 = scmp.le.s32.totalorder 2, %s33
      // Predicated region
      $region105: #{tpu_custom_call.1} parent=5 // pred_check
        %p1280 = pneg %p1279
      $region106: #{tpu_custom_call.1} parent=5 // pred_check_branch
        %1282 = sbr.rel (%p1280) target = $region108
      $region107: #{tpu_custom_call.1} parent=5 // pred_region
        %s1283 = ssub.s32 %s33, 2
        // Predicated region
        $region109: #{tpu_custom_call.1} parent=107 // pred_check
          %p1284 = pneg %p403
        $region110: #{tpu_custom_call.1} parent=107 // pred_check_branch
          %1286 = sbr.rel (%p1284) target = $region112
        $region111: #{tpu_custom_call.1} parent=107 // pred_region
          %s1287 = sand.u32 %s388, 1
          %s1288 = scalar_lea.sflag [#allocation4], %s1287
          %s1289 = sand.u32 %s388, 1
          %s1290 = smul.addr %s1289, 8
          %s1291 = scalar_lea.vmem [#allocation9], %s1290
          %1292 = dma.done %s1288, 128
        $region112: #{tpu_custom_call.1} parent=107 // pred_fallthru
          _
        // Predicated region
        $region113: #{tpu_custom_call.1} parent=107 // pred_check
          %p1293 = pneg %p429
        $region114: #{tpu_custom_call.1} parent=107 // pred_check_branch
          %1295 = sbr.rel (%p1293) target = $region116
        $region115: #{tpu_custom_call.1} parent=107 // pred_region
          %s1296 = sand.u32 %s414, 1
          %s1297 = scalar_lea.sflag [#allocation11], %s1296
          %s1298 = sand.u32 %s414, 1
          %s1299 = smul.addr %s1298, 8
          %s1300 = scalar_lea.vmem [#allocation10], %s1299
          %1301 = dma.done %s1297, 128
        $region116: #{tpu_custom_call.1} parent=107 // pred_fallthru
          _
      $region108: #{tpu_custom_call.1} parent=5 // pred_fallthru
        _
    $region6: #{tpu_custom_call.1} parent=1 // loop_footer
      %s37 = sadd.s32 1, %s33
    $region7: #{tpu_custom_call.1} parent=1 // loop_footer_branch
      %32 = sbr.rel target = $region3
    $region8: #{tpu_custom_call.1} parent=1 // loop_exit
      _
    %1302 = vsyncpa [#allocation3], 1
    %s1303 = scalar_lea.sflag [#allocation3], 1
    %1304 = vsyncpa %s1303, 1
    %1305 = vsyncpa [#allocation7], 1
    %1306 = vsyncpa [#allocation4], 1
    %s1307 = scalar_lea.sflag [#allocation4], 1
    %1308 = vsyncpa %s1307, 1
    %1309 = vsyncpa [#allocation11], 1
    %s1310 = scalar_lea.sflag [#allocation11], 1
    %1311 = vsyncpa %s1310, 1
    %1312 = vsyncpa [#allocation5], 1
    %s1313 = scalar_lea.sflag [#allocation5], 1
    %1314 = vsyncpa %s1313, 1

</llo_original>
